<compile_context>
chip_gen: v7x
topology: tpu7x:2x2x1
jax: 0.10.0
libtpu: 0.0.40
codegen_flags: <defaults>
</compile_context>

<pallas_src>
import functools

import jax
import jax.numpy as jnp
from jax.experimental import pallas as pl
from jax.experimental.pallas import tpu as pltpu


def _round_up(x, m):
    return ((x + m - 1) // m) * m


def generator_kernel(x_ref, w1_ref, b1_ref, w2_ref, b2_ref, o_ref, *, precision):
    # Fused MLP hot path: matmul -> bias -> relu -> matmul -> bias -> sigmoid.
    # Matmul inputs are bf16 (perf path) or f32 (strict path); accumulation,
    # bias add, ReLU and sigmoid are f32 (v5e VPU/EUP have no bf16).
    h = jnp.dot(x_ref[...], w1_ref[...],
                preferred_element_type=jnp.float32,
                precision=precision) + b1_ref[...]
    h = jnp.maximum(h, 0.0).astype(w2_ref.dtype)
    y = jnp.dot(h, w2_ref[...],
                preferred_element_type=jnp.float32,
                precision=precision) + b2_ref[...]
    o_ref[...] = jax.nn.sigmoid(y).astype(o_ref.dtype)


def prepare_params(w1, b1, w2, b2, *, use_bf16=True):
    """One-time dtype prep of the weights (call at init, NOT per forward)."""
    mm_dtype = jnp.bfloat16 if use_bf16 else jnp.float32
    return (w1.astype(mm_dtype),
            b1.astype(jnp.float32),
            w2.astype(mm_dtype),
            b2.astype(jnp.float32))


def generator_forward(x, params, *, tb=1024, use_bf16=True):
    """y = sigmoid(relu(x @ w1 + b1) @ w2 + b2).

    x:  (B, in_dim)       w1: (in_dim, hidden)   b1: (1, hidden)
    w2: (hidden, out_dim) b2: (1, out_dim)
    Weights are stored transposed vs. torch nn.Linear and pre-cast via
    prepare_params().  Perf path returns bf16; strict path returns f32.
    """
    w1, b1, w2, b2 = params
    B, in_dim = x.shape
    hidden = w1.shape[1]
    out_dim = w2.shape[1]
    assert hidden % 128 == 0, "hidden (=256 in this module) must be lane-dense"

    mm_dtype = jnp.bfloat16 if use_bf16 else jnp.float32
    out_dtype = jnp.bfloat16 if use_bf16 else jnp.float32
    precision = (jax.lax.Precision.DEFAULT if use_bf16
                 else jax.lax.Precision.HIGHEST)

    # Batch tile: at most `tb`, multiple of 8, and sized so that mid/large
    # batches produce >= 2 grid steps (v7x has 2 TensorCores per chip).
    half_batch = _round_up(max(1, (B + 1) // 2), 8)
    tb_eff = max(8, min(tb, half_batch))
    B_p = _round_up(B, tb_eff)

    # Only the batch dim ever gets padded (with zeros); padded rows are
    # sliced off below.  Feature dims stay at their true widths.
    x_in = x.astype(mm_dtype)
    if B_p != B:
        x_in = jnp.zeros((B_p, in_dim), mm_dtype).at[:B].set(x_in)

    out_full = pl.pallas_call(
        functools.partial(generator_kernel, precision=precision),
        out_shape=jax.ShapeDtypeStruct((B_p, out_dim), out_dtype),
        grid=(B_p // tb_eff,),
        in_specs=[
            pl.BlockSpec((tb_eff, in_dim), lambda i: (i, 0)),   # x batch tile
            pl.BlockSpec((in_dim, hidden), lambda i: (0, 0)),   # W1 resident
            pl.BlockSpec((1, hidden), lambda i: (0, 0)),        # b1 resident
            pl.BlockSpec((hidden, out_dim), lambda i: (0, 0)),  # W2 resident
            pl.BlockSpec((1, out_dim), lambda i: (0, 0)),       # b2 resident
        ],
        out_specs=pl.BlockSpec((tb_eff, out_dim), lambda i: (i, 0)),
        compiler_params=pltpu.CompilerParams(
            dimension_semantics=("parallel",),
            vmem_limit_bytes=32 * 1024 * 1024,   # headroom vs v7x 64 MiB VMEM
        ),
    )(x_in, w1, b1, w2, b2)

    return out_full[:B] if B_p != B else out_full


def init_params(key, in_dim, hidden, out_dim):
    # Deterministic synthetic init (PyTorch-style uniform(-1/sqrt(fan_in), +)).
    k1, k2, k3, k4 = jax.random.split(key, 4)
    lim1 = 1.0 / jnp.sqrt(in_dim)
    lim2 = 1.0 / jnp.sqrt(hidden)
    w1 = jax.random.uniform(k1, (in_dim, hidden), jnp.float32, -lim1, lim1)
    b1 = jax.random.uniform(k2, (1, hidden), jnp.float32, -lim1, lim1)
    w2 = jax.random.uniform(k3, (hidden, out_dim), jnp.float32, -lim2, lim2)
    b2 = jax.random.uniform(k4, (1, out_dim), jnp.float32, -lim2, lim2)
    return w1, b1, w2, b2


if __name__ == "__main__":
    B, IN_DIM, HIDDEN, OUT_DIM = 8, 32, 256, 64

    key = jax.random.PRNGKey(0)
    kx, kp = jax.random.split(key)
    x = jax.random.normal(kx, (B, IN_DIM), jnp.float32)
    w1, b1, w2, b2 = init_params(kp, IN_DIM, HIDDEN, OUT_DIM)

    # Reference in plain JAX (same semantics as the torch module), with
    # HIGHEST matmul precision so the strict-path comparison is meaningful.
    h_ref = jnp.maximum(
        jnp.dot(x, w1, precision=jax.lax.Precision.HIGHEST) + b1, 0.0)
    ref = jax.nn.sigmoid(
        jnp.dot(h_ref, w2, precision=jax.lax.Precision.HIGHEST) + b2)

    # Strict-numerics path (f32 matmuls, HIGHEST precision) — tight tolerance.
    params_f32 = prepare_params(w1, b1, w2, b2, use_bf16=False)
    out_f32 = generator_forward(x, params_f32, use_bf16=False)
    out_f32 = jax.block_until_ready(out_f32)
    assert out_f32.shape == (B, OUT_DIM)
    assert out_f32.dtype == jnp.float32
    assert jnp.allclose(out_f32, ref, atol=1e-5, rtol=1e-5)

    # Performance path (bf16 MXU inputs + bf16 output, f32 accumulation /
    # activations) — loose tolerance.  Note: x itself is quantized to bf16
    # before the kernel, which is fine under this tolerance.
    params_bf16 = prepare_params(w1, b1, w2, b2, use_bf16=True)
    out_bf16 = generator_forward(x, params_bf16, use_bf16=True)
    out_bf16 = jax.block_until_ready(out_bf16)
    assert out_bf16.shape == (B, OUT_DIM)
    assert out_bf16.dtype == jnp.bfloat16
    assert jnp.allclose(out_bf16.astype(jnp.float32), ref, atol=2e-2, rtol=2e-2)

    print("KERNEL_OK")
</pallas_src>

<mosaic_0001>
module attributes {stable_mosaic.version = 11 : i64} {
  func.func @generator_kernel(%arg0: i32, %arg1: memref<8x32xf32, #tpu.memory_space<vmem>>, %arg2: memref<32x256xf32, #tpu.memory_space<vmem>>, %arg3: memref<1x256xf32, #tpu.memory_space<vmem>>, %arg4: memref<256x64xf32, #tpu.memory_space<vmem>>, %arg5: memref<1x64xf32, #tpu.memory_space<vmem>>, %arg6: memref<8x64xf32, #tpu.memory_space<vmem>>) attributes {dimension_semantics = [#tpu.dimension_semantics<parallel>], iteration_bounds = array<i64: 1>, scalar_prefetch = 0 : i64, scratch_operands = 0 : i64, tpu.core_type = #tpu.core_type<tc>, window_params = [{transform_indices = @transform_0, window_bounds = array<i64: 8, 32>}, {pipeline_mode = #tpu.pipeline_mode<synchronous>, transform_indices = @transform_1, window_bounds = array<i64: 32, 256>}, {pipeline_mode = #tpu.pipeline_mode<synchronous>, transform_indices = @transform_2, window_bounds = array<i64: 1, 256>}, {pipeline_mode = #tpu.pipeline_mode<synchronous>, transform_indices = @transform_3, window_bounds = array<i64: 256, 64>}, {pipeline_mode = #tpu.pipeline_mode<synchronous>, transform_indices = @transform_4, window_bounds = array<i64: 1, 64>}, {transform_indices = @transform_5, window_bounds = array<i64: 8, 64>}]} {
    %c0 = arith.constant 0 : index
    %c0_0 = arith.constant 0 : index
    %0 = vector.load %arg1[%c0, %c0_0] : memref<8x32xf32, #tpu.memory_space<vmem>>, vector<8x32xf32>
    %c0_1 = arith.constant 0 : index
    %c0_2 = arith.constant 0 : index
    %1 = vector.load %arg2[%c0_1, %c0_2] : memref<32x256xf32, #tpu.memory_space<vmem>>, vector<32x256xf32>
    %cst = arith.constant dense<0.000000e+00> : vector<8x256xf32>
    %2 = tpu.matmul %0, %1, %cst {dimension_numbers = #tpu.dot_dimension_numbers<[1], [0], [0], [1], [0, 0, 1, 1], [], []>, precision = #tpu.contract_precision<fp32>} : vector<8x32xf32>, vector<32x256xf32>, vector<8x256xf32> -> vector<8x256xf32>
    %c0_3 = arith.constant 0 : index
    %c0_4 = arith.constant 0 : index
    %3 = vector.load %arg3[%c0_3, %c0_4] : memref<1x256xf32, #tpu.memory_space<vmem>>, vector<1x256xf32>
    %4 = vector.broadcast %3 : vector<1x256xf32> to vector<8x256xf32>
    %5 = arith.addf %2, %4 : vector<8x256xf32>
    %cst_5 = arith.constant 0.000000e+00 : f32
    %6 = vector.broadcast %cst_5 : f32 to vector<8x256xf32>
    %7 = arith.maximumf %5, %6 : vector<8x256xf32>
    %c0_6 = arith.constant 0 : index
    %c0_7 = arith.constant 0 : index
    %8 = vector.load %arg4[%c0_6, %c0_7] : memref<256x64xf32, #tpu.memory_space<vmem>>, vector<256x64xf32>
    %cst_8 = arith.constant dense<0.000000e+00> : vector<8x64xf32>
    %9 = tpu.matmul %7, %8, %cst_8 {dimension_numbers = #tpu.dot_dimension_numbers<[1], [0], [0], [1], [0, 0, 1, 1], [], []>, precision = #tpu.contract_precision<fp32>} : vector<8x256xf32>, vector<256x64xf32>, vector<8x64xf32> -> vector<8x64xf32>
    %c0_9 = arith.constant 0 : index
    %c0_10 = arith.constant 0 : index
    %10 = vector.load %arg5[%c0_9, %c0_10] : memref<1x64xf32, #tpu.memory_space<vmem>>, vector<1x64xf32>
    %11 = vector.broadcast %10 : vector<1x64xf32> to vector<8x64xf32>
    %12 = arith.addf %9, %11 : vector<8x64xf32>
    %13 = arith.negf %12 : vector<8x64xf32>
    %14 = math.exp %13 : vector<8x64xf32>
    %cst_11 = arith.constant 1.000000e+00 : f32
    %15 = vector.broadcast %cst_11 : f32 to vector<8x64xf32>
    %16 = arith.addf %15, %14 : vector<8x64xf32>
    %17 = arith.divf %15, %16 : vector<8x64xf32>
    %c0_12 = arith.constant 0 : index
    %c0_13 = arith.constant 0 : index
    %18 = vector.load %arg6[%c0_12, %c0_13] : memref<8x64xf32, #tpu.memory_space<vmem>>, vector<8x64xf32>
    tpu.vector_store %arg6[%c0_12, %c0_13], %17 {strides = array<i32>} : memref<8x64xf32, #tpu.memory_space<vmem>>, vector<8x64xf32>,
    return
  }
  func.func @transform_0(%arg0: i32) -> (i32, i32) {
    %c0_i32 = arith.constant 0 : i32
    %c0_i32_0 = arith.constant 0 : i32
    return %arg0, %c0_i32 : i32, i32
  }
  func.func @transform_1(%arg0: i32) -> (i32, i32) {
    %c0_i32 = arith.constant 0 : i32
    %c0_i32_0 = arith.constant 0 : i32
    %c0_i32_1 = arith.constant 0 : i32
    return %c0_i32, %c0_i32_0 : i32, i32
  }
  func.func @transform_2(%arg0: i32) -> (i32, i32) {
    %c0_i32 = arith.constant 0 : i32
    %c0_i32_0 = arith.constant 0 : i32
    %c0_i32_1 = arith.constant 0 : i32
    return %c0_i32, %c0_i32_0 : i32, i32
  }
  func.func @transform_3(%arg0: i32) -> (i32, i32) {
    %c0_i32 = arith.constant 0 : i32
    %c0_i32_0 = arith.constant 0 : i32
    %c0_i32_1 = arith.constant 0 : i32
    return %c0_i32, %c0_i32_0 : i32, i32
  }
  func.func @transform_4(%arg0: i32) -> (i32, i32) {
    %c0_i32 = arith.constant 0 : i32
    %c0_i32_0 = arith.constant 0 : i32
    %c0_i32_1 = arith.constant 0 : i32
    return %c0_i32, %c0_i32_0 : i32, i32
  }
  func.func @transform_5(%arg0: i32) -> (i32, i32) {
    %c0_i32 = arith.constant 0 : i32
    %c0_i32_0 = arith.constant 0 : i32
    return %arg0, %c0_i32 : i32, i32
  }
}

</mosaic_0001>

<llo_original>
// kernel: tpu_custom_call.1
$region0: #{tpu_custom_call.1}
  #allocation0 [shape = 'u32[]', space=smem, size = 0x4, offset = 0x4, fixed_abs, tag = 'smem constant byte address 0x4 - core index']
  #allocation1 [shape = 'u32[144,128]{1,0:T(1,128)}', space=vmem, size = 0x12000, scoped, tag = 'internal scratch']
  %s0 = inlined_call_operand.vmem [shape: f32[8,32], index: 0, kind: input, shape index: {}]
  %s1 = inlined_call_operand.vmem [shape: f32[32,256], index: 1, kind: input, shape index: {}]
  %s2 = inlined_call_operand.vmem [shape: f32[1,256], index: 2, kind: input, shape index: {}]
  %s3 = inlined_call_operand.vmem [shape: f32[256,64], index: 3, kind: input, shape index: {}]
  %s4 = inlined_call_operand.vmem [shape: f32[1,64], index: 4, kind: input, shape index: {}]
  %s5 = inlined_call_operand.hbm [shape: f32[8,64], index: 5, kind: output, shape index: {}]
  %s6 = sld [smem:[#allocation0]]
  $region30: #{tpu_custom_call.1} parent=0
    _
  %s8 = ssub.s32 1, %s6
  %s9 = scalar_select 0, %s8, %s6
  $region1: #{tpu_custom_call.1} parent=0
    #allocation2 [shape = 'u8[4096]{0}', space=vmem, size = 0x1000, scoped, tag = 'output window, operand 0, single buffered']
    #allocation3 [shape = 's32[1]{0}', space=sflag, size = 0x4, scoped, tag = 'scoped memory for tpu_custom_call.1']
    %10 = vsyncpa [#allocation3], 0
    // Predicated region
    $region2: #{tpu_custom_call.1} parent=1 // pred_check
      _
    $region3: #{tpu_custom_call.1} parent=1 // pred_check_branch
      %12 = sbr.rel (0) target = $region5
    $region4: #{tpu_custom_call.1} parent=1 // pred_region
      _
    $region5: #{tpu_custom_call.1} parent=1 // pred_fallthru
      _
    // Predicated region
    $region6: #{tpu_custom_call.1} parent=1 // pred_check
      _
    $region7: #{tpu_custom_call.1} parent=1 // pred_check_branch
      %14 = sbr.rel (0) target = $region9
    $region8: #{tpu_custom_call.1} parent=1 // pred_region
      _
    $region9: #{tpu_custom_call.1} parent=1 // pred_fallthru
      _
    // Predicated region
    $region10: #{tpu_custom_call.1} parent=1 // pred_check
      _
    $region11: #{tpu_custom_call.1} parent=1 // pred_check_branch
      %16 = sbr.rel (0) target = $region13
    $region12: #{tpu_custom_call.1} parent=1 // pred_region
      _
    $region13: #{tpu_custom_call.1} parent=1 // pred_fallthru
      _
    // Predicated region
    $region14: #{tpu_custom_call.1} parent=1 // pred_check
      _
    $region15: #{tpu_custom_call.1} parent=1 // pred_check_branch
      %18 = sbr.rel (0) target = $region17
    $region16: #{tpu_custom_call.1} parent=1 // pred_region
      _
    $region17: #{tpu_custom_call.1} parent=1 // pred_fallthru
      _
    // Predicated region
    $region18: #{tpu_custom_call.1} parent=1 // pred_check
      _
    $region19: #{tpu_custom_call.1} parent=1 // pred_check_branch
      %20 = sbr.rel (0) target = $region21
    $region20: #{tpu_custom_call.1} parent=1 // pred_region
      _
    $region21: #{tpu_custom_call.1} parent=1 // pred_fallthru
      _
    %v21 = vld [vmem:[%s0] sm:$0xff]
    %v22 = vld [vmem:[%s1] sm:$0xff]
    %v23 = vld [vmem:[%s1 + $0x8] sm:$0xff]
    %v24 = vld [vmem:[%s1 + $0x10] sm:$0xff]
    %v25 = vld [vmem:[%s1 + $0x18] sm:$0xff]
    %v26 = vld [vmem:[%s1 + $0x20] sm:$0xff]
    %v27 = vld [vmem:[%s1 + $0x28] sm:$0xff]
    %v28 = vld [vmem:[%s1 + $0x30] sm:$0xff]
    %v29 = vld [vmem:[%s1 + $0x38] sm:$0xff]
    %v30 = vld [vmem:[%s2] sm:$0x3]
    %v32 = vlaneseq
    %v33 = vshrl.u32 %v32, 7
    %v34 = vsub.s32 0, %v33
    %v35 = vrot.slane %v30, %v34
    %v36 = vlaneseq
    %v37 = vshrl.u32 %v36, 7
    %v38 = vsub.s32 1, %v37
    %v39 = vrot.slane %v30, %v38
    %vm42 = vcmask 261120
    %v44 = vsel %vm42, %v21, 0
    %v46 = vand.u32 %v23, 4294901760
    %47 = vmatprep.subr.mxu0 %v46
    %v48 = vand.u32 %v22, 4294901760
    %49 = vmatpush1.msra.mxu0 %v48
    %v50 = vand.u32 %v25, 4294901760
    %51 = vmatprep.subr.mxu0 %v50
    %v52 = vand.u32 %v24, 4294901760
    %53 = vmatpush1.msra.mxu0 %v52
    %v54 = vand.u32 %v27, 4294901760
    %55 = vmatprep.subr.mxu0 %v54
    %v56 = vand.u32 %v26, 4294901760
    %57 = vmatpush1.msra.mxu0 %v56
    %v58 = vand.u32 %v29, 4294901760
    %59 = vmatprep.subr.mxu0 %v58
    %v60 = vand.u32 %v28, 4294901760
    %61 = vmatpush1.msra.mxu0 %v60
    %62 = vmatprep.subr.mxu0 0.0
    %63 = vmatpush1.msra.mxu0 0.0
    %64 = vmatprep.subr.mxu0 0.0
    %65 = vmatpush1.msra.mxu0 0.0
    %66 = vmatprep.subr.mxu0 0.0
    %67 = vmatpush1.msra.mxu0 0.0
    %68 = vmatprep.subr.mxu0 0.0
    %69 = vmatpush1.msra.mxu0 0.0
    %70 = vmatprep.subr.mxu0 0.0
    %71 = vmatpush1.msra.mxu0 0.0
    %72 = vmatprep.subr.mxu0 0.0
    %73 = vmatpush1.msra.mxu0 0.0
    %74 = vmatprep.subr.mxu0 0.0
    %75 = vmatpush1.msra.mxu0 0.0
    %76 = vmatprep.subr.mxu0 0.0
    %77 = vmatpush1.msra.mxu0 0.0
    %78 = vmatprep.subr.mxu0 0.0
    %79 = vmatpush1.msra.mxu0 0.0
    %80 = vmatprep.subr.mxu0 0.0
    %81 = vmatpush1.msra.mxu0 0.0
    %82 = vmatprep.subr.mxu0 0.0
    %83 = vmatpush1.msra.mxu0 0.0
    %84 = vmatprep.subr.mxu0 0.0
    %85 = vmatpush1.msra.mxu0 0.0
    %86 = vmatprep.subr.mxu0 0.0
    %87 = vmatpush1.msra.mxu0 0.0
    %88 = vmatprep.subr.mxu0 0.0
    %89 = vmatpush1.msra.mxu0 0.0
    %90 = vmatprep.subr.mxu0 0.0
    %91 = vmatpush1.msra.mxu0 0.0
    %92 = vmatprep.subr.mxu0 0.0
    %93 = vmatpush1.msra.mxu0 0.0
    %94 = vmatprep.subr.mxu0 0.0
    %95 = vmatpush1.msra.mxu0 0.0
    %96 = vmatprep.subr.mxu0 0.0
    %97 = vmatpush1.msra.mxu0 0.0
    %98 = vmatprep.subr.mxu0 0.0
    %99 = vmatpush1.msra.mxu0 0.0
    %100 = vmatprep.subr.mxu0 0.0
    %101 = vmatpush1.msra.mxu0 0.0
    %102 = vmatprep.subr.mxu0 0.0
    %103 = vmatpush1.msra.mxu0 0.0
    %104 = vmatprep.subr.mxu0 0.0
    %105 = vmatpush1.msra.mxu0 0.0
    %106 = vmatprep.subr.mxu0 0.0
    %107 = vmatpush1.msra.mxu0 0.0
    %108 = vmatprep.subr.mxu0 0.0
    %109 = vmatpush1.msra.mxu0 0.0
    %110 = vmatprep.subr.mxu0 0.0
    %111 = vmatpush1.msra.mxu0 0.0
    %112 = vmatprep.subr.mxu0 0.0
    %113 = vmatpush1.msra.mxu0 0.0
    %114 = vmatprep.subr.mxu0 0.0
    %115 = vmatpush1.msra.mxu0 0.0
    %116 = vmatprep.subr.mxu0 0.0
    %117 = vmatpush1.msra.mxu0 0.0
    %118 = vmatprep.mubr.f32.mxu0 0.0
    %v119 = vand.u32 %v44, 4294901760
    %v120 = vsub.f32 %v44, %v119
    %v121 = vand.u32 %v120, 4294901760
    %v122 = vsub.f32 %v120, %v121
    %v123 = vand.u32 %v122, 4294901760
    %124 = vmatmul.mubr.f32.gmra.mrb[0].mxu0 %v123
    %v125 = vpop.f32.mrb[0].mxu0
    %v126 = vadd.f32 %v35, %v125
    %v127 = vpop.f32.mrb[0].mxu0
    %v128 = vadd.f32 %v39, %v127
    %129 = vdwg.mxu0
    %v130 = vand.u32 %v23, 4294901760
    %v131 = vsub.f32 %v23, %v130
    %v132 = vand.u32 %v131, 4294901760
    %v133 = vsub.f32 %v131, %v132
    %v134 = vand.u32 %v133, 4294901760
    %135 = vmatprep.subr.mxu0 %v134
    %v136 = vand.u32 %v22, 4294901760
    %v137 = vsub.f32 %v22, %v136
    %v138 = vand.u32 %v137, 4294901760
    %v139 = vsub.f32 %v137, %v138
    %v140 = vand.u32 %v139, 4294901760
    %141 = vmatpush1.msra.mxu0 %v140
    %v142 = vand.u32 %v25, 4294901760
    %v143 = vsub.f32 %v25, %v142
    %v144 = vand.u32 %v143, 4294901760
    %v145 = vsub.f32 %v143, %v144
    %v146 = vand.u32 %v145, 4294901760
    %147 = vmatprep.subr.mxu0 %v146
    %v148 = vand.u32 %v24, 4294901760
    %v149 = vsub.f32 %v24, %v148
    %v150 = vand.u32 %v149, 4294901760
    %v151 = vsub.f32 %v149, %v150
    %v152 = vand.u32 %v151, 4294901760
    %153 = vmatpush1.msra.mxu0 %v152
    %v154 = vand.u32 %v27, 4294901760
    %v155 = vsub.f32 %v27, %v154
    %v156 = vand.u32 %v155, 4294901760
    %v157 = vsub.f32 %v155, %v156
    %v158 = vand.u32 %v157, 4294901760
    %159 = vmatprep.subr.mxu0 %v158
    %v160 = vand.u32 %v26, 4294901760
    %v161 = vsub.f32 %v26, %v160
    %v162 = vand.u32 %v161, 4294901760
    %v163 = vsub.f32 %v161, %v162
    %v164 = vand.u32 %v163, 4294901760
    %165 = vmatpush1.msra.mxu0 %v164
    %v166 = vand.u32 %v29, 4294901760
    %v167 = vsub.f32 %v29, %v166
    %v168 = vand.u32 %v167, 4294901760
    %v169 = vsub.f32 %v167, %v168
    %v170 = vand.u32 %v169, 4294901760
    %171 = vmatprep.subr.mxu0 %v170
    %v172 = vand.u32 %v28, 4294901760
    %v173 = vsub.f32 %v28, %v172
    %v174 = vand.u32 %v173, 4294901760
    %v175 = vsub.f32 %v173, %v174
    %v176 = vand.u32 %v175, 4294901760
    %177 = vmatpush1.msra.mxu0 %v176
    %178 = vmatprep.subr.mxu0 0.0
    %179 = vmatpush1.msra.mxu0 0.0
    %180 = vmatprep.subr.mxu0 0.0
    %181 = vmatpush1.msra.mxu0 0.0
    %182 = vmatprep.subr.mxu0 0.0
    %183 = vmatpush1.msra.mxu0 0.0
    %184 = vmatprep.subr.mxu0 0.0
    %185 = vmatpush1.msra.mxu0 0.0
    %186 = vmatprep.subr.mxu0 0.0
    %187 = vmatpush1.msra.mxu0 0.0
    %188 = vmatprep.subr.mxu0 0.0
    %189 = vmatpush1.msra.mxu0 0.0
    %190 = vmatprep.subr.mxu0 0.0
    %191 = vmatpush1.msra.mxu0 0.0
    %192 = vmatprep.subr.mxu0 0.0
    %193 = vmatpush1.msra.mxu0 0.0
    %194 = vmatprep.subr.mxu0 0.0
    %195 = vmatpush1.msra.mxu0 0.0
    %196 = vmatprep.subr.mxu0 0.0
    %197 = vmatpush1.msra.mxu0 0.0
    %198 = vmatprep.subr.mxu0 0.0
    %199 = vmatpush1.msra.mxu0 0.0
    %200 = vmatprep.subr.mxu0 0.0
    %201 = vmatpush1.msra.mxu0 0.0
    %202 = vmatprep.subr.mxu0 0.0
    %203 = vmatpush1.msra.mxu0 0.0
    %204 = vmatprep.subr.mxu0 0.0
    %205 = vmatpush1.msra.mxu0 0.0
    %206 = vmatprep.subr.mxu0 0.0
    %207 = vmatpush1.msra.mxu0 0.0
    %208 = vmatprep.subr.mxu0 0.0
    %209 = vmatpush1.msra.mxu0 0.0
    %210 = vmatprep.subr.mxu0 0.0
    %211 = vmatpush1.msra.mxu0 0.0
    %212 = vmatprep.subr.mxu0 0.0
    %213 = vmatpush1.msra.mxu0 0.0
    %214 = vmatprep.subr.mxu0 0.0
    %215 = vmatpush1.msra.mxu0 0.0
    %216 = vmatprep.subr.mxu0 0.0
    %217 = vmatpush1.msra.mxu0 0.0
    %218 = vmatprep.subr.mxu0 0.0
    %219 = vmatpush1.msra.mxu0 0.0
    %220 = vmatprep.subr.mxu0 0.0
    %221 = vmatpush1.msra.mxu0 0.0
    %222 = vmatprep.subr.mxu0 0.0
    %223 = vmatpush1.msra.mxu0 0.0
    %224 = vmatprep.subr.mxu0 0.0
    %225 = vmatpush1.msra.mxu0 0.0
    %226 = vmatprep.subr.mxu0 0.0
    %227 = vmatpush1.msra.mxu0 0.0
    %228 = vmatprep.subr.mxu0 0.0
    %229 = vmatpush1.msra.mxu0 0.0
    %230 = vmatprep.subr.mxu0 0.0
    %231 = vmatpush1.msra.mxu0 0.0
    %232 = vmatprep.subr.mxu0 0.0
    %233 = vmatpush1.msra.mxu0 0.0
    %234 = vmatprep.mubr.f32.mxu0 0.0
    %v235 = vand.u32 %v44, 4294901760
    %236 = vmatmul.mubr.f32.gmra.mrb[0].mxu0 %v235
    %v237 = vpop.f32.mrb[0].mxu0
    %v238 = vadd.f32 %v126, %v237
    %v239 = vpop.f32.mrb[0].mxu0
    %v240 = vadd.f32 %v128, %v239
    %241 = vdwg.mxu0
    %v242 = vand.u32 %v23, 4294901760
    %v243 = vsub.f32 %v23, %v242
    %244 = vmatprep.subr.mxu0 %v243
    %v245 = vand.u32 %v22, 4294901760
    %v246 = vsub.f32 %v22, %v245
    %247 = vmatpush1.msra.mxu0 %v246
    %v248 = vand.u32 %v25, 4294901760
    %v249 = vsub.f32 %v25, %v248
    %250 = vmatprep.subr.mxu0 %v249
    %v251 = vand.u32 %v24, 4294901760
    %v252 = vsub.f32 %v24, %v251
    %253 = vmatpush1.msra.mxu0 %v252
    %v254 = vand.u32 %v27, 4294901760
    %v255 = vsub.f32 %v27, %v254
    %256 = vmatprep.subr.mxu0 %v255
    %v257 = vand.u32 %v26, 4294901760
    %v258 = vsub.f32 %v26, %v257
    %259 = vmatpush1.msra.mxu0 %v258
    %v260 = vand.u32 %v29, 4294901760
    %v261 = vsub.f32 %v29, %v260
    %262 = vmatprep.subr.mxu0 %v261
    %v263 = vand.u32 %v28, 4294901760
    %v264 = vsub.f32 %v28, %v263
    %265 = vmatpush1.msra.mxu0 %v264
    %266 = vmatprep.subr.mxu0 0.0
    %267 = vmatpush1.msra.mxu0 0.0
    %268 = vmatprep.subr.mxu0 0.0
    %269 = vmatpush1.msra.mxu0 0.0
    %270 = vmatprep.subr.mxu0 0.0
    %271 = vmatpush1.msra.mxu0 0.0
    %272 = vmatprep.subr.mxu0 0.0
    %273 = vmatpush1.msra.mxu0 0.0
    %274 = vmatprep.subr.mxu0 0.0
    %275 = vmatpush1.msra.mxu0 0.0
    %276 = vmatprep.subr.mxu0 0.0
    %277 = vmatpush1.msra.mxu0 0.0
    %278 = vmatprep.subr.mxu0 0.0
    %279 = vmatpush1.msra.mxu0 0.0
    %280 = vmatprep.subr.mxu0 0.0
    %281 = vmatpush1.msra.mxu0 0.0
    %282 = vmatprep.subr.mxu0 0.0
    %283 = vmatpush1.msra.mxu0 0.0
    %284 = vmatprep.subr.mxu0 0.0
    %285 = vmatpush1.msra.mxu0 0.0
    %286 = vmatprep.subr.mxu0 0.0
    %287 = vmatpush1.msra.mxu0 0.0
    %288 = vmatprep.subr.mxu0 0.0
    %289 = vmatpush1.msra.mxu0 0.0
    %290 = vmatprep.subr.mxu0 0.0
    %291 = vmatpush1.msra.mxu0 0.0
    %292 = vmatprep.subr.mxu0 0.0
    %293 = vmatpush1.msra.mxu0 0.0
    %294 = vmatprep.subr.mxu0 0.0
    %295 = vmatpush1.msra.mxu0 0.0
    %296 = vmatprep.subr.mxu0 0.0
    %297 = vmatpush1.msra.mxu0 0.0
    %298 = vmatprep.subr.mxu0 0.0
    %299 = vmatpush1.msra.mxu0 0.0
    %300 = vmatprep.subr.mxu0 0.0
    %301 = vmatpush1.msra.mxu0 0.0
    %302 = vmatprep.subr.mxu0 0.0
    %303 = vmatpush1.msra.mxu0 0.0
    %304 = vmatprep.subr.mxu0 0.0
    %305 = vmatpush1.msra.mxu0 0.0
    %306 = vmatprep.subr.mxu0 0.0
    %307 = vmatpush1.msra.mxu0 0.0
    %308 = vmatprep.subr.mxu0 0.0
    %309 = vmatpush1.msra.mxu0 0.0
    %310 = vmatprep.subr.mxu0 0.0
    %311 = vmatpush1.msra.mxu0 0.0
    %312 = vmatprep.subr.mxu0 0.0
    %313 = vmatpush1.msra.mxu0 0.0
    %314 = vmatprep.subr.mxu0 0.0
    %315 = vmatpush1.msra.mxu0 0.0
    %316 = vmatprep.subr.mxu0 0.0
    %317 = vmatpush1.msra.mxu0 0.0
    %318 = vmatprep.subr.mxu0 0.0
    %319 = vmatpush1.msra.mxu0 0.0
    %320 = vmatprep.subr.mxu0 0.0
    %321 = vmatpush1.msra.mxu0 0.0
    %322 = vmatprep.mubr.f32.mxu0 0.0
    %v323 = vand.u32 %v44, 4294901760
    %v324 = vsub.f32 %v44, %v323
    %325 = vmatmul.mubr.f32.gmra.mrb[0].mxu0 %v324
    %v326 = vpop.f32.mrb[0].mxu0
    %v327 = vadd.f32 %v238, %v326
    %v328 = vpop.f32.mrb[0].mxu0
    %v329 = vadd.f32 %v240, %v328
    %330 = vdwg.mxu0
    %v331 = vand.u32 %v23, 4294901760
    %332 = vmatprep.subr.mxu0 %v331
    %v333 = vand.u32 %v22, 4294901760
    %334 = vmatpush1.msra.mxu0 %v333
    %v335 = vand.u32 %v25, 4294901760
    %336 = vmatprep.subr.mxu0 %v335
    %v337 = vand.u32 %v24, 4294901760
    %338 = vmatpush1.msra.mxu0 %v337
    %v339 = vand.u32 %v27, 4294901760
    %340 = vmatprep.subr.mxu0 %v339
    %v341 = vand.u32 %v26, 4294901760
    %342 = vmatpush1.msra.mxu0 %v341
    %v343 = vand.u32 %v29, 4294901760
    %344 = vmatprep.subr.mxu0 %v343
    %v345 = vand.u32 %v28, 4294901760
    %346 = vmatpush1.msra.mxu0 %v345
    %347 = vmatprep.subr.mxu0 0.0
    %348 = vmatpush1.msra.mxu0 0.0
    %349 = vmatprep.subr.mxu0 0.0
    %350 = vmatpush1.msra.mxu0 0.0
    %351 = vmatprep.subr.mxu0 0.0
    %352 = vmatpush1.msra.mxu0 0.0
    %353 = vmatprep.subr.mxu0 0.0
    %354 = vmatpush1.msra.mxu0 0.0
    %355 = vmatprep.subr.mxu0 0.0
    %356 = vmatpush1.msra.mxu0 0.0
    %357 = vmatprep.subr.mxu0 0.0
    %358 = vmatpush1.msra.mxu0 0.0
    %359 = vmatprep.subr.mxu0 0.0
    %360 = vmatpush1.msra.mxu0 0.0
    %361 = vmatprep.subr.mxu0 0.0
    %362 = vmatpush1.msra.mxu0 0.0
    %363 = vmatprep.subr.mxu0 0.0
    %364 = vmatpush1.msra.mxu0 0.0
    %365 = vmatprep.subr.mxu0 0.0
    %366 = vmatpush1.msra.mxu0 0.0
    %367 = vmatprep.subr.mxu0 0.0
    %368 = vmatpush1.msra.mxu0 0.0
    %369 = vmatprep.subr.mxu0 0.0
    %370 = vmatpush1.msra.mxu0 0.0
    %371 = vmatprep.subr.mxu0 0.0
    %372 = vmatpush1.msra.mxu0 0.0
    %373 = vmatprep.subr.mxu0 0.0
    %374 = vmatpush1.msra.mxu0 0.0
    %375 = vmatprep.subr.mxu0 0.0
    %376 = vmatpush1.msra.mxu0 0.0
    %377 = vmatprep.subr.mxu0 0.0
    %378 = vmatpush1.msra.mxu0 0.0
    %379 = vmatprep.subr.mxu0 0.0
    %380 = vmatpush1.msra.mxu0 0.0
    %381 = vmatprep.subr.mxu0 0.0
    %382 = vmatpush1.msra.mxu0 0.0
    %383 = vmatprep.subr.mxu0 0.0
    %384 = vmatpush1.msra.mxu0 0.0
    %385 = vmatprep.subr.mxu0 0.0
    %386 = vmatpush1.msra.mxu0 0.0
    %387 = vmatprep.subr.mxu0 0.0
    %388 = vmatpush1.msra.mxu0 0.0
    %389 = vmatprep.subr.mxu0 0.0
    %390 = vmatpush1.msra.mxu0 0.0
    %391 = vmatprep.subr.mxu0 0.0
    %392 = vmatpush1.msra.mxu0 0.0
    %393 = vmatprep.subr.mxu0 0.0
    %394 = vmatpush1.msra.mxu0 0.0
    %395 = vmatprep.subr.mxu0 0.0
    %396 = vmatpush1.msra.mxu0 0.0
    %397 = vmatprep.subr.mxu0 0.0
    %398 = vmatpush1.msra.mxu0 0.0
    %399 = vmatprep.subr.mxu0 0.0
    %400 = vmatpush1.msra.mxu0 0.0
    %401 = vmatprep.subr.mxu0 0.0
    %402 = vmatpush1.msra.mxu0 0.0
    %403 = vmatprep.mubr.f32.mxu0 0.0
    %v404 = vand.u32 %v44, 4294901760
    %v405 = vsub.f32 %v44, %v404
    %v406 = vand.u32 %v405, 4294901760
    %407 = vmatmul.mubr.f32.gmra.mrb[0].mxu0 %v406
    %v408 = vpop.f32.mrb[0].mxu0
    %v409 = vadd.f32 %v327, %v408
    %v410 = vpop.f32.mrb[0].mxu0
    %v411 = vadd.f32 %v329, %v410
    %412 = vdwg.mxu0
    %v413 = vand.u32 %v23, 4294901760
    %v414 = vsub.f32 %v23, %v413
    %v415 = vand.u32 %v414, 4294901760
    %416 = vmatprep.subr.mxu0 %v415
    %v417 = vand.u32 %v22, 4294901760
    %v418 = vsub.f32 %v22, %v417
    %v419 = vand.u32 %v418, 4294901760
    %420 = vmatpush1.msra.mxu0 %v419
    %v421 = vand.u32 %v25, 4294901760
    %v422 = vsub.f32 %v25, %v421
    %v423 = vand.u32 %v422, 4294901760
    %424 = vmatprep.subr.mxu0 %v423
    %v425 = vand.u32 %v24, 4294901760
    %v426 = vsub.f32 %v24, %v425
    %v427 = vand.u32 %v426, 4294901760
    %428 = vmatpush1.msra.mxu0 %v427
    %v429 = vand.u32 %v27, 4294901760
    %v430 = vsub.f32 %v27, %v429
    %v431 = vand.u32 %v430, 4294901760
    %432 = vmatprep.subr.mxu0 %v431
    %v433 = vand.u32 %v26, 4294901760
    %v434 = vsub.f32 %v26, %v433
    %v435 = vand.u32 %v434, 4294901760
    %436 = vmatpush1.msra.mxu0 %v435
    %v437 = vand.u32 %v29, 4294901760
    %v438 = vsub.f32 %v29, %v437
    %v439 = vand.u32 %v438, 4294901760
    %440 = vmatprep.subr.mxu0 %v439
    %v441 = vand.u32 %v28, 4294901760
    %v442 = vsub.f32 %v28, %v441
    %v443 = vand.u32 %v442, 4294901760
    %444 = vmatpush1.msra.mxu0 %v443
    %445 = vmatprep.subr.mxu0 0.0
    %446 = vmatpush1.msra.mxu0 0.0
    %447 = vmatprep.subr.mxu0 0.0
    %448 = vmatpush1.msra.mxu0 0.0
    %449 = vmatprep.subr.mxu0 0.0
    %450 = vmatpush1.msra.mxu0 0.0
    %451 = vmatprep.subr.mxu0 0.0
    %452 = vmatpush1.msra.mxu0 0.0
    %453 = vmatprep.subr.mxu0 0.0
    %454 = vmatpush1.msra.mxu0 0.0
    %455 = vmatprep.subr.mxu0 0.0
    %456 = vmatpush1.msra.mxu0 0.0
    %457 = vmatprep.subr.mxu0 0.0
    %458 = vmatpush1.msra.mxu0 0.0
    %459 = vmatprep.subr.mxu0 0.0
    %460 = vmatpush1.msra.mxu0 0.0
    %461 = vmatprep.subr.mxu0 0.0
    %462 = vmatpush1.msra.mxu0 0.0
    %463 = vmatprep.subr.mxu0 0.0
    %464 = vmatpush1.msra.mxu0 0.0
    %465 = vmatprep.subr.mxu0 0.0
    %466 = vmatpush1.msra.mxu0 0.0
    %467 = vmatprep.subr.mxu0 0.0
    %468 = vmatpush1.msra.mxu0 0.0
    %469 = vmatprep.subr.mxu0 0.0
    %470 = vmatpush1.msra.mxu0 0.0
    %471 = vmatprep.subr.mxu0 0.0
    %472 = vmatpush1.msra.mxu0 0.0
    %473 = vmatprep.subr.mxu0 0.0
    %474 = vmatpush1.msra.mxu0 0.0
    %475 = vmatprep.subr.mxu0 0.0
    %476 = vmatpush1.msra.mxu0 0.0
    %477 = vmatprep.subr.mxu0 0.0
    %478 = vmatpush1.msra.mxu0 0.0
    %479 = vmatprep.subr.mxu0 0.0
    %480 = vmatpush1.msra.mxu0 0.0
    %481 = vmatprep.subr.mxu0 0.0
    %482 = vmatpush1.msra.mxu0 0.0
    %483 = vmatprep.subr.mxu0 0.0
    %484 = vmatpush1.msra.mxu0 0.0
    %485 = vmatprep.subr.mxu0 0.0
    %486 = vmatpush1.msra.mxu0 0.0
    %487 = vmatprep.subr.mxu0 0.0
    %488 = vmatpush1.msra.mxu0 0.0
    %489 = vmatprep.subr.mxu0 0.0
    %490 = vmatpush1.msra.mxu0 0.0
    %491 = vmatprep.subr.mxu0 0.0
    %492 = vmatpush1.msra.mxu0 0.0
    %493 = vmatprep.subr.mxu0 0.0
    %494 = vmatpush1.msra.mxu0 0.0
    %495 = vmatprep.subr.mxu0 0.0
    %496 = vmatpush1.msra.mxu0 0.0
    %497 = vmatprep.subr.mxu0 0.0
    %498 = vmatpush1.msra.mxu0 0.0
    %499 = vmatprep.subr.mxu0 0.0
    %500 = vmatpush1.msra.mxu0 0.0
    %501 = vmatprep.mubr.f32.mxu0 0.0
    %v502 = vand.u32 %v44, 4294901760
    %503 = vmatmul.mubr.f32.gmra.mrb[0].mxu0 %v502
    %v504 = vpop.f32.mrb[0].mxu0
    %v505 = vadd.f32 %v409, %v504
    %v506 = vpop.f32.mrb[0].mxu0
    %v507 = vadd.f32 %v411, %v506
    %508 = vdwg.mxu0
    %v509 = vand.u32 %v23, 4294901760
    %510 = vmatprep.subr.mxu0 %v509
    %v511 = vand.u32 %v22, 4294901760
    %512 = vmatpush1.msra.mxu0 %v511
    %v513 = vand.u32 %v25, 4294901760
    %514 = vmatprep.subr.mxu0 %v513
    %v515 = vand.u32 %v24, 4294901760
    %516 = vmatpush1.msra.mxu0 %v515
    %v517 = vand.u32 %v27, 4294901760
    %518 = vmatprep.subr.mxu0 %v517
    %v519 = vand.u32 %v26, 4294901760
    %520 = vmatpush1.msra.mxu0 %v519
    %v521 = vand.u32 %v29, 4294901760
    %522 = vmatprep.subr.mxu0 %v521
    %v523 = vand.u32 %v28, 4294901760
    %524 = vmatpush1.msra.mxu0 %v523
    %525 = vmatprep.subr.mxu0 0.0
    %526 = vmatpush1.msra.mxu0 0.0
    %527 = vmatprep.subr.mxu0 0.0
    %528 = vmatpush1.msra.mxu0 0.0
    %529 = vmatprep.subr.mxu0 0.0
    %530 = vmatpush1.msra.mxu0 0.0
    %531 = vmatprep.subr.mxu0 0.0
    %532 = vmatpush1.msra.mxu0 0.0
    %533 = vmatprep.subr.mxu0 0.0
    %534 = vmatpush1.msra.mxu0 0.0
    %535 = vmatprep.subr.mxu0 0.0
    %536 = vmatpush1.msra.mxu0 0.0
    %537 = vmatprep.subr.mxu0 0.0
    %538 = vmatpush1.msra.mxu0 0.0
    %539 = vmatprep.subr.mxu0 0.0
    %540 = vmatpush1.msra.mxu0 0.0
    %541 = vmatprep.subr.mxu0 0.0
    %542 = vmatpush1.msra.mxu0 0.0
    %543 = vmatprep.subr.mxu0 0.0
    %544 = vmatpush1.msra.mxu0 0.0
    %545 = vmatprep.subr.mxu0 0.0
    %546 = vmatpush1.msra.mxu0 0.0
    %547 = vmatprep.subr.mxu0 0.0
    %548 = vmatpush1.msra.mxu0 0.0
    %549 = vmatprep.subr.mxu0 0.0
    %550 = vmatpush1.msra.mxu0 0.0
    %551 = vmatprep.subr.mxu0 0.0
    %552 = vmatpush1.msra.mxu0 0.0
    %553 = vmatprep.subr.mxu0 0.0
    %554 = vmatpush1.msra.mxu0 0.0
    %555 = vmatprep.subr.mxu0 0.0
    %556 = vmatpush1.msra.mxu0 0.0
    %557 = vmatprep.subr.mxu0 0.0
    %558 = vmatpush1.msra.mxu0 0.0
    %559 = vmatprep.subr.mxu0 0.0
    %560 = vmatpush1.msra.mxu0 0.0
    %561 = vmatprep.subr.mxu0 0.0
    %562 = vmatpush1.msra.mxu0 0.0
    %563 = vmatprep.subr.mxu0 0.0
    %564 = vmatpush1.msra.mxu0 0.0
    %565 = vmatprep.subr.mxu0 0.0
    %566 = vmatpush1.msra.mxu0 0.0
    %567 = vmatprep.subr.mxu0 0.0
    %568 = vmatpush1.msra.mxu0 0.0
    %569 = vmatprep.subr.mxu0 0.0
    %570 = vmatpush1.msra.mxu0 0.0
    %571 = vmatprep.subr.mxu0 0.0
    %572 = vmatpush1.msra.mxu0 0.0
    %573 = vmatprep.subr.mxu0 0.0
    %574 = vmatpush1.msra.mxu0 0.0
    %575 = vmatprep.subr.mxu0 0.0
    %576 = vmatpush1.msra.mxu0 0.0
    %577 = vmatprep.subr.mxu0 0.0
    %578 = vmatpush1.msra.mxu0 0.0
    %579 = vmatprep.subr.mxu0 0.0
    %580 = vmatpush1.msra.mxu0 0.0
    %581 = vmatprep.mubr.f32.mxu0 0.0
    %v582 = vand.u32 %v44, 4294901760
    %583 = vmatmul.mubr.f32.gmra.mrb[0].mxu0 %v582
    %v584 = vpop.f32.mrb[0].mxu0
    %v585 = vadd.f32 %v505, %v584
    %v586 = vpop.f32.mrb[0].mxu0
    %v587 = vadd.f32 %v507, %v586
    %588 = vdwg.mxu0
    %v589 = vmax.f32 %v585, 0.0
    %v590 = vmax.f32 %v587, 0.0
    %v591 = vld [vmem:[%s3] sm:$0xff]
    %v592 = vld [vmem:[%s3 + $0x8] sm:$0xff]
    %v593 = vld [vmem:[%s3 + $0x10] sm:$0xff]
    %v594 = vld [vmem:[%s3 + $0x18] sm:$0xff]
    %v595 = vld [vmem:[%s3 + $0x20] sm:$0xff]
    %v596 = vld [vmem:[%s3 + $0x28] sm:$0xff]
    %v597 = vld [vmem:[%s3 + $0x30] sm:$0xff]
    %v598 = vld [vmem:[%s3 + $0x38] sm:$0xff]
    %v599 = vld [vmem:[%s3 + $0x40] sm:$0xff]
    %v600 = vld [vmem:[%s3 + $0x48] sm:$0xff]
    %v601 = vld [vmem:[%s3 + $0x50] sm:$0xff]
    %v602 = vld [vmem:[%s3 + $0x58] sm:$0xff]
    %v603 = vld [vmem:[%s3 + $0x60] sm:$0xff]
    %v604 = vld [vmem:[%s3 + $0x68] sm:$0xff]
    %v605 = vld [vmem:[%s3 + $0x70] sm:$0xff]
    %v606 = vld [vmem:[%s3 + $0x78] sm:$0xff]
    %v607 = vld [vmem:[%s3 + $0x80] sm:$0xff]
    %v608 = vld [vmem:[%s3 + $0x88] sm:$0xff]
    %v609 = vld [vmem:[%s3 + $0x90] sm:$0xff]
    %v610 = vld [vmem:[%s3 + $0x98] sm:$0xff]
    %v611 = vld [vmem:[%s3 + $0xa0] sm:$0xff]
    %v612 = vld [vmem:[%s3 + $0xa8] sm:$0xff]
    %v613 = vld [vmem:[%s3 + $0xb0] sm:$0xff]
    %v614 = vld [vmem:[%s3 + $0xb8] sm:$0xff]
    %v615 = vld [vmem:[%s3 + $0xc0] sm:$0xff]
    %v616 = vld [vmem:[%s3 + $0xc8] sm:$0xff]
    %v617 = vld [vmem:[%s3 + $0xd0] sm:$0xff]
    %v618 = vld [vmem:[%s3 + $0xd8] sm:$0xff]
    %v619 = vld [vmem:[%s3 + $0xe0] sm:$0xff]
    %v620 = vld [vmem:[%s3 + $0xe8] sm:$0xff]
    %v621 = vld [vmem:[%s3 + $0xf0] sm:$0xff]
    %v622 = vld [vmem:[%s3 + $0xf8] sm:$0xff]
    %v623 = vld [vmem:[%s4] sm:$0x1]
    %v625 = vlaneseq
    %v626 = vshrl.u32 %v625, 7
    %v627 = vsub.s32 0, %v626
    %v628 = vrot.slane %v623, %v627
    %630 = vmatprep.subr.mxu0 0.0
    %v631 = vand.u32 %v591, 4294901760
    %632 = vmatpush1.msra.mxu0 %v631
    %633 = vmatprep.subr.mxu0 0.0
    %v634 = vand.u32 %v592, 4294901760
    %635 = vmatpush1.msra.mxu0 %v634
    %636 = vmatprep.subr.mxu0 0.0
    %v637 = vand.u32 %v593, 4294901760
    %638 = vmatpush1.msra.mxu0 %v637
    %639 = vmatprep.subr.mxu0 0.0
    %v640 = vand.u32 %v594, 4294901760
    %641 = vmatpush1.msra.mxu0 %v640
    %642 = vmatprep.subr.mxu0 0.0
    %v643 = vand.u32 %v595, 4294901760
    %644 = vmatpush1.msra.mxu0 %v643
    %645 = vmatprep.subr.mxu0 0.0
    %v646 = vand.u32 %v596, 4294901760
    %647 = vmatpush1.msra.mxu0 %v646
    %648 = vmatprep.subr.mxu0 0.0
    %v649 = vand.u32 %v597, 4294901760
    %650 = vmatpush1.msra.mxu0 %v649
    %651 = vmatprep.subr.mxu0 0.0
    %v652 = vand.u32 %v598, 4294901760
    %653 = vmatpush1.msra.mxu0 %v652
    %654 = vmatprep.subr.mxu0 0.0
    %v655 = vand.u32 %v599, 4294901760
    %656 = vmatpush1.msra.mxu0 %v655
    %657 = vmatprep.subr.mxu0 0.0
    %v658 = vand.u32 %v600, 4294901760
    %659 = vmatpush1.msra.mxu0 %v658
    %660 = vmatprep.subr.mxu0 0.0
    %v661 = vand.u32 %v601, 4294901760
    %662 = vmatpush1.msra.mxu0 %v661
    %663 = vmatprep.subr.mxu0 0.0
    %v664 = vand.u32 %v602, 4294901760
    %665 = vmatpush1.msra.mxu0 %v664
    %666 = vmatprep.subr.mxu0 0.0
    %v667 = vand.u32 %v603, 4294901760
    %668 = vmatpush1.msra.mxu0 %v667
    %669 = vmatprep.subr.mxu0 0.0
    %v670 = vand.u32 %v604, 4294901760
    %671 = vmatpush1.msra.mxu0 %v670
    %672 = vmatprep.subr.mxu0 0.0
    %v673 = vand.u32 %v605, 4294901760
    %674 = vmatpush1.msra.mxu0 %v673
    %675 = vmatprep.subr.mxu0 0.0
    %v676 = vand.u32 %v606, 4294901760
    %677 = vmatpush1.msra.mxu0 %v676
    %678 = vmatprep.subr.mxu0 0.0
    %v679 = vand.u32 %v607, 4294901760
    %680 = vmatpush1.msra.mxu0 %v679
    %681 = vmatprep.subr.mxu0 0.0
    %v682 = vand.u32 %v608, 4294901760
    %683 = vmatpush1.msra.mxu0 %v682
    %684 = vmatprep.subr.mxu0 0.0
    %v685 = vand.u32 %v609, 4294901760
    %686 = vmatpush1.msra.mxu0 %v685
    %687 = vmatprep.subr.mxu0 0.0
    %v688 = vand.u32 %v610, 4294901760
    %689 = vmatpush1.msra.mxu0 %v688
    %690 = vmatprep.subr.mxu0 0.0
    %v691 = vand.u32 %v611, 4294901760
    %692 = vmatpush1.msra.mxu0 %v691
    %693 = vmatprep.subr.mxu0 0.0
    %v694 = vand.u32 %v612, 4294901760
    %695 = vmatpush1.msra.mxu0 %v694
    %696 = vmatprep.subr.mxu0 0.0
    %v697 = vand.u32 %v613, 4294901760
    %698 = vmatpush1.msra.mxu0 %v697
    %699 = vmatprep.subr.mxu0 0.0
    %v700 = vand.u32 %v614, 4294901760
    %701 = vmatpush1.msra.mxu0 %v700
    %702 = vmatprep.subr.mxu0 0.0
    %v703 = vand.u32 %v615, 4294901760
    %704 = vmatpush1.msra.mxu0 %v703
    %705 = vmatprep.subr.mxu0 0.0
    %v706 = vand.u32 %v616, 4294901760
    %707 = vmatpush1.msra.mxu0 %v706
    %708 = vmatprep.subr.mxu0 0.0
    %v709 = vand.u32 %v617, 4294901760
    %710 = vmatpush1.msra.mxu0 %v709
    %711 = vmatprep.subr.mxu0 0.0
    %v712 = vand.u32 %v618, 4294901760
    %713 = vmatpush1.msra.mxu0 %v712
    %714 = vmatprep.subr.mxu0 0.0
    %v715 = vand.u32 %v619, 4294901760
    %716 = vmatpush1.msra.mxu0 %v715
    %717 = vmatprep.subr.mxu0 0.0
    %v718 = vand.u32 %v620, 4294901760
    %719 = vmatpush1.msra.mxu0 %v718
    %720 = vmatprep.subr.mxu0 0.0
    %v721 = vand.u32 %v621, 4294901760
    %722 = vmatpush1.msra.mxu0 %v721
    %723 = vmatprep.subr.mxu0 0.0
    %v724 = vand.u32 %v622, 4294901760
    %725 = vmatpush1.msra.mxu0 %v724
    %v726 = vand.u32 %v590, 4294901760
    %v727 = vsub.f32 %v590, %v726
    %v728 = vand.u32 %v727, 4294901760
    %v729 = vsub.f32 %v727, %v728
    %v730 = vand.u32 %v729, 4294901760
    %731 = vmatprep.mubr.f32.mxu0 %v730
    %v732 = vand.u32 %v589, 4294901760
    %v733 = vsub.f32 %v589, %v732
    %v734 = vand.u32 %v733, 4294901760
    %v735 = vsub.f32 %v733, %v734
    %v736 = vand.u32 %v735, 4294901760
    %737 = vmatmul.mubr.f32.gmra.mrb[0].mxu0 %v736
    %v738 = vpop.f32.mrb[0].mxu0
    %v739 = vadd.f32 %v628, %v738
    %v740 = vpop.f32.mrb[0].mxu0
    %741 = vdwg.mxu0
    %742 = vmatprep.subr.mxu0 0.0
    %v743 = vand.u32 %v591, 4294901760
    %v744 = vsub.f32 %v591, %v743
    %v745 = vand.u32 %v744, 4294901760
    %v746 = vsub.f32 %v744, %v745
    %v747 = vand.u32 %v746, 4294901760
    %748 = vmatpush1.msra.mxu0 %v747
    %749 = vmatprep.subr.mxu0 0.0
    %v750 = vand.u32 %v592, 4294901760
    %v751 = vsub.f32 %v592, %v750
    %v752 = vand.u32 %v751, 4294901760
    %v753 = vsub.f32 %v751, %v752
    %v754 = vand.u32 %v753, 4294901760
    %755 = vmatpush1.msra.mxu0 %v754
    %756 = vmatprep.subr.mxu0 0.0
    %v757 = vand.u32 %v593, 4294901760
    %v758 = vsub.f32 %v593, %v757
    %v759 = vand.u32 %v758, 4294901760
    %v760 = vsub.f32 %v758, %v759
    %v761 = vand.u32 %v760, 4294901760
    %762 = vmatpush1.msra.mxu0 %v761
    %763 = vmatprep.subr.mxu0 0.0
    %v764 = vand.u32 %v594, 4294901760
    %v765 = vsub.f32 %v594, %v764
    %v766 = vand.u32 %v765, 4294901760
    %v767 = vsub.f32 %v765, %v766
    %v768 = vand.u32 %v767, 4294901760
    %769 = vmatpush1.msra.mxu0 %v768
    %770 = vmatprep.subr.mxu0 0.0
    %v771 = vand.u32 %v595, 4294901760
    %v772 = vsub.f32 %v595, %v771
    %v773 = vand.u32 %v772, 4294901760
    %v774 = vsub.f32 %v772, %v773
    %v775 = vand.u32 %v774, 4294901760
    %776 = vmatpush1.msra.mxu0 %v775
    %777 = vmatprep.subr.mxu0 0.0
    %v778 = vand.u32 %v596, 4294901760
    %v779 = vsub.f32 %v596, %v778
    %v780 = vand.u32 %v779, 4294901760
    %v781 = vsub.f32 %v779, %v780
    %v782 = vand.u32 %v781, 4294901760
    %783 = vmatpush1.msra.mxu0 %v782
    %784 = vmatprep.subr.mxu0 0.0
    %v785 = vand.u32 %v597, 4294901760
    %v786 = vsub.f32 %v597, %v785
    %v787 = vand.u32 %v786, 4294901760
    %v788 = vsub.f32 %v786, %v787
    %v789 = vand.u32 %v788, 4294901760
    %790 = vmatpush1.msra.mxu0 %v789
    %791 = vmatprep.subr.mxu0 0.0
    %v792 = vand.u32 %v598, 4294901760
    %v793 = vsub.f32 %v598, %v792
    %v794 = vand.u32 %v793, 4294901760
    %v795 = vsub.f32 %v793, %v794
    %v796 = vand.u32 %v795, 4294901760
    %797 = vmatpush1.msra.mxu0 %v796
    %798 = vmatprep.subr.mxu0 0.0
    %v799 = vand.u32 %v599, 4294901760
    %v800 = vsub.f32 %v599, %v799
    %v801 = vand.u32 %v800, 4294901760
    %v802 = vsub.f32 %v800, %v801
    %v803 = vand.u32 %v802, 4294901760
    %804 = vmatpush1.msra.mxu0 %v803
    %805 = vmatprep.subr.mxu0 0.0
    %v806 = vand.u32 %v600, 4294901760
    %v807 = vsub.f32 %v600, %v806
    %v808 = vand.u32 %v807, 4294901760
    %v809 = vsub.f32 %v807, %v808
    %v810 = vand.u32 %v809, 4294901760
    %811 = vmatpush1.msra.mxu0 %v810
    %812 = vmatprep.subr.mxu0 0.0
    %v813 = vand.u32 %v601, 4294901760
    %v814 = vsub.f32 %v601, %v813
    %v815 = vand.u32 %v814, 4294901760
    %v816 = vsub.f32 %v814, %v815
    %v817 = vand.u32 %v816, 4294901760
    %818 = vmatpush1.msra.mxu0 %v817
    %819 = vmatprep.subr.mxu0 0.0
    %v820 = vand.u32 %v602, 4294901760
    %v821 = vsub.f32 %v602, %v820
    %v822 = vand.u32 %v821, 4294901760
    %v823 = vsub.f32 %v821, %v822
    %v824 = vand.u32 %v823, 4294901760
    %825 = vmatpush1.msra.mxu0 %v824
    %826 = vmatprep.subr.mxu0 0.0
    %v827 = vand.u32 %v603, 4294901760
    %v828 = vsub.f32 %v603, %v827
    %v829 = vand.u32 %v828, 4294901760
    %v830 = vsub.f32 %v828, %v829
    %v831 = vand.u32 %v830, 4294901760
    %832 = vmatpush1.msra.mxu0 %v831
    %833 = vmatprep.subr.mxu0 0.0
    %v834 = vand.u32 %v604, 4294901760
    %v835 = vsub.f32 %v604, %v834
    %v836 = vand.u32 %v835, 4294901760
    %v837 = vsub.f32 %v835, %v836
    %v838 = vand.u32 %v837, 4294901760
    %839 = vmatpush1.msra.mxu0 %v838
    %840 = vmatprep.subr.mxu0 0.0
    %v841 = vand.u32 %v605, 4294901760
    %v842 = vsub.f32 %v605, %v841
    %v843 = vand.u32 %v842, 4294901760
    %v844 = vsub.f32 %v842, %v843
    %v845 = vand.u32 %v844, 4294901760
    %846 = vmatpush1.msra.mxu0 %v845
    %847 = vmatprep.subr.mxu0 0.0
    %v848 = vand.u32 %v606, 4294901760
    %v849 = vsub.f32 %v606, %v848
    %v850 = vand.u32 %v849, 4294901760
    %v851 = vsub.f32 %v849, %v850
    %v852 = vand.u32 %v851, 4294901760
    %853 = vmatpush1.msra.mxu0 %v852
    %854 = vmatprep.subr.mxu0 0.0
    %v855 = vand.u32 %v607, 4294901760
    %v856 = vsub.f32 %v607, %v855
    %v857 = vand.u32 %v856, 4294901760
    %v858 = vsub.f32 %v856, %v857
    %v859 = vand.u32 %v858, 4294901760
    %860 = vmatpush1.msra.mxu0 %v859
    %861 = vmatprep.subr.mxu0 0.0
    %v862 = vand.u32 %v608, 4294901760
    %v863 = vsub.f32 %v608, %v862
    %v864 = vand.u32 %v863, 4294901760
    %v865 = vsub.f32 %v863, %v864
    %v866 = vand.u32 %v865, 4294901760
    %867 = vmatpush1.msra.mxu0 %v866
    %868 = vmatprep.subr.mxu0 0.0
    %v869 = vand.u32 %v609, 4294901760
    %v870 = vsub.f32 %v609, %v869
    %v871 = vand.u32 %v870, 4294901760
    %v872 = vsub.f32 %v870, %v871
    %v873 = vand.u32 %v872, 4294901760
    %874 = vmatpush1.msra.mxu0 %v873
    %875 = vmatprep.subr.mxu0 0.0
    %v876 = vand.u32 %v610, 4294901760
    %v877 = vsub.f32 %v610, %v876
    %v878 = vand.u32 %v877, 4294901760
    %v879 = vsub.f32 %v877, %v878
    %v880 = vand.u32 %v879, 4294901760
    %881 = vmatpush1.msra.mxu0 %v880
    %882 = vmatprep.subr.mxu0 0.0
    %v883 = vand.u32 %v611, 4294901760
    %v884 = vsub.f32 %v611, %v883
    %v885 = vand.u32 %v884, 4294901760
    %v886 = vsub.f32 %v884, %v885
    %v887 = vand.u32 %v886, 4294901760
    %888 = vmatpush1.msra.mxu0 %v887
    %889 = vmatprep.subr.mxu0 0.0
    %v890 = vand.u32 %v612, 4294901760
    %v891 = vsub.f32 %v612, %v890
    %v892 = vand.u32 %v891, 4294901760
    %v893 = vsub.f32 %v891, %v892
    %v894 = vand.u32 %v893, 4294901760
    %895 = vmatpush1.msra.mxu0 %v894
    %896 = vmatprep.subr.mxu0 0.0
    %v897 = vand.u32 %v613, 4294901760
    %v898 = vsub.f32 %v613, %v897
    %v899 = vand.u32 %v898, 4294901760
    %v900 = vsub.f32 %v898, %v899
    %v901 = vand.u32 %v900, 4294901760
    %902 = vmatpush1.msra.mxu0 %v901
    %903 = vmatprep.subr.mxu0 0.0
    %v904 = vand.u32 %v614, 4294901760
    %v905 = vsub.f32 %v614, %v904
    %v906 = vand.u32 %v905, 4294901760
    %v907 = vsub.f32 %v905, %v906
    %v908 = vand.u32 %v907, 4294901760
    %909 = vmatpush1.msra.mxu0 %v908
    %910 = vmatprep.subr.mxu0 0.0
    %v911 = vand.u32 %v615, 4294901760
    %v912 = vsub.f32 %v615, %v911
    %v913 = vand.u32 %v912, 4294901760
    %v914 = vsub.f32 %v912, %v913
    %v915 = vand.u32 %v914, 4294901760
    %916 = vmatpush1.msra.mxu0 %v915
    %917 = vmatprep.subr.mxu0 0.0
    %v918 = vand.u32 %v616, 4294901760
    %v919 = vsub.f32 %v616, %v918
    %v920 = vand.u32 %v919, 4294901760
    %v921 = vsub.f32 %v919, %v920
    %v922 = vand.u32 %v921, 4294901760
    %923 = vmatpush1.msra.mxu0 %v922
    %924 = vmatprep.subr.mxu0 0.0
    %v925 = vand.u32 %v617, 4294901760
    %v926 = vsub.f32 %v617, %v925
    %v927 = vand.u32 %v926, 4294901760
    %v928 = vsub.f32 %v926, %v927
    %v929 = vand.u32 %v928, 4294901760
    %930 = vmatpush1.msra.mxu0 %v929
    %931 = vmatprep.subr.mxu0 0.0
    %v932 = vand.u32 %v618, 4294901760
    %v933 = vsub.f32 %v618, %v932
    %v934 = vand.u32 %v933, 4294901760
    %v935 = vsub.f32 %v933, %v934
    %v936 = vand.u32 %v935, 4294901760
    %937 = vmatpush1.msra.mxu0 %v936
    %938 = vmatprep.subr.mxu0 0.0
    %v939 = vand.u32 %v619, 4294901760
    %v940 = vsub.f32 %v619, %v939
    %v941 = vand.u32 %v940, 4294901760
    %v942 = vsub.f32 %v940, %v941
    %v943 = vand.u32 %v942, 4294901760
    %944 = vmatpush1.msra.mxu0 %v943
    %945 = vmatprep.subr.mxu0 0.0
    %v946 = vand.u32 %v620, 4294901760
    %v947 = vsub.f32 %v620, %v946
    %v948 = vand.u32 %v947, 4294901760
    %v949 = vsub.f32 %v947, %v948
    %v950 = vand.u32 %v949, 4294901760
    %951 = vmatpush1.msra.mxu0 %v950
    %952 = vmatprep.subr.mxu0 0.0
    %v953 = vand.u32 %v621, 4294901760
    %v954 = vsub.f32 %v621, %v953
    %v955 = vand.u32 %v954, 4294901760
    %v956 = vsub.f32 %v954, %v955
    %v957 = vand.u32 %v956, 4294901760
    %958 = vmatpush1.msra.mxu0 %v957
    %959 = vmatprep.subr.mxu0 0.0
    %v960 = vand.u32 %v622, 4294901760
    %v961 = vsub.f32 %v622, %v960
    %v962 = vand.u32 %v961, 4294901760
    %v963 = vsub.f32 %v961, %v962
    %v964 = vand.u32 %v963, 4294901760
    %965 = vmatpush1.msra.mxu0 %v964
    %v966 = vand.u32 %v590, 4294901760
    %967 = vmatprep.mubr.f32.mxu0 %v966
    %v968 = vand.u32 %v589, 4294901760
    %969 = vmatmul.mubr.f32.gmra.mrb[0].mxu0 %v968
    %v970 = vpop.f32.mrb[0].mxu0
    %v971 = vadd.f32 %v739, %v970
    %v972 = vpop.f32.mrb[0].mxu0
    %973 = vdwg.mxu0
    %974 = vmatprep.subr.mxu0 0.0
    %v975 = vand.u32 %v591, 4294901760
    %v976 = vsub.f32 %v591, %v975
    %977 = vmatpush1.msra.mxu0 %v976
    %978 = vmatprep.subr.mxu0 0.0
    %v979 = vand.u32 %v592, 4294901760
    %v980 = vsub.f32 %v592, %v979
    %981 = vmatpush1.msra.mxu0 %v980
    %982 = vmatprep.subr.mxu0 0.0
    %v983 = vand.u32 %v593, 4294901760
    %v984 = vsub.f32 %v593, %v983
    %985 = vmatpush1.msra.mxu0 %v984
    %986 = vmatprep.subr.mxu0 0.0
    %v987 = vand.u32 %v594, 4294901760
    %v988 = vsub.f32 %v594, %v987
    %989 = vmatpush1.msra.mxu0 %v988
    %990 = vmatprep.subr.mxu0 0.0
    %v991 = vand.u32 %v595, 4294901760
    %v992 = vsub.f32 %v595, %v991
    %993 = vmatpush1.msra.mxu0 %v992
    %994 = vmatprep.subr.mxu0 0.0
    %v995 = vand.u32 %v596, 4294901760
    %v996 = vsub.f32 %v596, %v995
    %997 = vmatpush1.msra.mxu0 %v996
    %998 = vmatprep.subr.mxu0 0.0
    %v999 = vand.u32 %v597, 4294901760
    %v1000 = vsub.f32 %v597, %v999
    %1001 = vmatpush1.msra.mxu0 %v1000
    %1002 = vmatprep.subr.mxu0 0.0
    %v1003 = vand.u32 %v598, 4294901760
    %v1004 = vsub.f32 %v598, %v1003
    %1005 = vmatpush1.msra.mxu0 %v1004
    %1006 = vmatprep.subr.mxu0 0.0
    %v1007 = vand.u32 %v599, 4294901760
    %v1008 = vsub.f32 %v599, %v1007
    %1009 = vmatpush1.msra.mxu0 %v1008
    %1010 = vmatprep.subr.mxu0 0.0
    %v1011 = vand.u32 %v600, 4294901760
    %v1012 = vsub.f32 %v600, %v1011
    %1013 = vmatpush1.msra.mxu0 %v1012
    %1014 = vmatprep.subr.mxu0 0.0
    %v1015 = vand.u32 %v601, 4294901760
    %v1016 = vsub.f32 %v601, %v1015
    %1017 = vmatpush1.msra.mxu0 %v1016
    %1018 = vmatprep.subr.mxu0 0.0
    %v1019 = vand.u32 %v602, 4294901760
    %v1020 = vsub.f32 %v602, %v1019
    %1021 = vmatpush1.msra.mxu0 %v1020
    %1022 = vmatprep.subr.mxu0 0.0
    %v1023 = vand.u32 %v603, 4294901760
    %v1024 = vsub.f32 %v603, %v1023
    %1025 = vmatpush1.msra.mxu0 %v1024
    %1026 = vmatprep.subr.mxu0 0.0
    %v1027 = vand.u32 %v604, 4294901760
    %v1028 = vsub.f32 %v604, %v1027
    %1029 = vmatpush1.msra.mxu0 %v1028
    %1030 = vmatprep.subr.mxu0 0.0
    %v1031 = vand.u32 %v605, 4294901760
    %v1032 = vsub.f32 %v605, %v1031
    %1033 = vmatpush1.msra.mxu0 %v1032
    %1034 = vmatprep.subr.mxu0 0.0
    %v1035 = vand.u32 %v606, 4294901760
    %v1036 = vsub.f32 %v606, %v1035
    %1037 = vmatpush1.msra.mxu0 %v1036
    %1038 = vmatprep.subr.mxu0 0.0
    %v1039 = vand.u32 %v607, 4294901760
    %v1040 = vsub.f32 %v607, %v1039
    %1041 = vmatpush1.msra.mxu0 %v1040
    %1042 = vmatprep.subr.mxu0 0.0
    %v1043 = vand.u32 %v608, 4294901760
    %v1044 = vsub.f32 %v608, %v1043
    %1045 = vmatpush1.msra.mxu0 %v1044
    %1046 = vmatprep.subr.mxu0 0.0
    %v1047 = vand.u32 %v609, 4294901760
    %v1048 = vsub.f32 %v609, %v1047
    %1049 = vmatpush1.msra.mxu0 %v1048
    %1050 = vmatprep.subr.mxu0 0.0
    %v1051 = vand.u32 %v610, 4294901760
    %v1052 = vsub.f32 %v610, %v1051
    %1053 = vmatpush1.msra.mxu0 %v1052
    %1054 = vmatprep.subr.mxu0 0.0
    %v1055 = vand.u32 %v611, 4294901760
    %v1056 = vsub.f32 %v611, %v1055
    %1057 = vmatpush1.msra.mxu0 %v1056
    %1058 = vmatprep.subr.mxu0 0.0
    %v1059 = vand.u32 %v612, 4294901760
    %v1060 = vsub.f32 %v612, %v1059
    %1061 = vmatpush1.msra.mxu0 %v1060
    %1062 = vmatprep.subr.mxu0 0.0
    %v1063 = vand.u32 %v613, 4294901760
    %v1064 = vsub.f32 %v613, %v1063
    %1065 = vmatpush1.msra.mxu0 %v1064
    %1066 = vmatprep.subr.mxu0 0.0
    %v1067 = vand.u32 %v614, 4294901760
    %v1068 = vsub.f32 %v614, %v1067
    %1069 = vmatpush1.msra.mxu0 %v1068
    %1070 = vmatprep.subr.mxu0 0.0
    %v1071 = vand.u32 %v615, 4294901760
    %v1072 = vsub.f32 %v615, %v1071
    %1073 = vmatpush1.msra.mxu0 %v1072
    %1074 = vmatprep.subr.mxu0 0.0
    %v1075 = vand.u32 %v616, 4294901760
    %v1076 = vsub.f32 %v616, %v1075
    %1077 = vmatpush1.msra.mxu0 %v1076
    %1078 = vmatprep.subr.mxu0 0.0
    %v1079 = vand.u32 %v617, 4294901760
    %v1080 = vsub.f32 %v617, %v1079
    %1081 = vmatpush1.msra.mxu0 %v1080
    %1082 = vmatprep.subr.mxu0 0.0
    %v1083 = vand.u32 %v618, 4294901760
    %v1084 = vsub.f32 %v618, %v1083
    %1085 = vmatpush1.msra.mxu0 %v1084
    %1086 = vmatprep.subr.mxu0 0.0
    %v1087 = vand.u32 %v619, 4294901760
    %v1088 = vsub.f32 %v619, %v1087
    %1089 = vmatpush1.msra.mxu0 %v1088
    %1090 = vmatprep.subr.mxu0 0.0
    %v1091 = vand.u32 %v620, 4294901760
    %v1092 = vsub.f32 %v620, %v1091
    %1093 = vmatpush1.msra.mxu0 %v1092
    %1094 = vmatprep.subr.mxu0 0.0
    %v1095 = vand.u32 %v621, 4294901760
    %v1096 = vsub.f32 %v621, %v1095
    %1097 = vmatpush1.msra.mxu0 %v1096
    %1098 = vmatprep.subr.mxu0 0.0
    %v1099 = vand.u32 %v622, 4294901760
    %v1100 = vsub.f32 %v622, %v1099
    %1101 = vmatpush1.msra.mxu0 %v1100
    %v1102 = vand.u32 %v590, 4294901760
    %v1103 = vsub.f32 %v590, %v1102
    %1104 = vmatprep.mubr.f32.mxu0 %v1103
    %v1105 = vand.u32 %v589, 4294901760
    %v1106 = vsub.f32 %v589, %v1105
    %1107 = vmatmul.mubr.f32.gmra.mrb[0].mxu0 %v1106
    %v1108 = vpop.f32.mrb[0].mxu0
    %v1109 = vadd.f32 %v971, %v1108
    %v1110 = vpop.f32.mrb[0].mxu0
    %1111 = vdwg.mxu0
    %1112 = vmatprep.subr.mxu0 0.0
    %v1113 = vand.u32 %v591, 4294901760
    %1114 = vmatpush1.msra.mxu0 %v1113
    %1115 = vmatprep.subr.mxu0 0.0
    %v1116 = vand.u32 %v592, 4294901760
    %1117 = vmatpush1.msra.mxu0 %v1116
    %1118 = vmatprep.subr.mxu0 0.0
    %v1119 = vand.u32 %v593, 4294901760
    %1120 = vmatpush1.msra.mxu0 %v1119
    %1121 = vmatprep.subr.mxu0 0.0
    %v1122 = vand.u32 %v594, 4294901760
    %1123 = vmatpush1.msra.mxu0 %v1122
    %1124 = vmatprep.subr.mxu0 0.0
    %v1125 = vand.u32 %v595, 4294901760
    %1126 = vmatpush1.msra.mxu0 %v1125
    %1127 = vmatprep.subr.mxu0 0.0
    %v1128 = vand.u32 %v596, 4294901760
    %1129 = vmatpush1.msra.mxu0 %v1128
    %1130 = vmatprep.subr.mxu0 0.0
    %v1131 = vand.u32 %v597, 4294901760
    %1132 = vmatpush1.msra.mxu0 %v1131
    %1133 = vmatprep.subr.mxu0 0.0
    %v1134 = vand.u32 %v598, 4294901760
    %1135 = vmatpush1.msra.mxu0 %v1134
    %1136 = vmatprep.subr.mxu0 0.0
    %v1137 = vand.u32 %v599, 4294901760
    %1138 = vmatpush1.msra.mxu0 %v1137
    %1139 = vmatprep.subr.mxu0 0.0
    %v1140 = vand.u32 %v600, 4294901760
    %1141 = vmatpush1.msra.mxu0 %v1140
    %1142 = vmatprep.subr.mxu0 0.0
    %v1143 = vand.u32 %v601, 4294901760
    %1144 = vmatpush1.msra.mxu0 %v1143
    %1145 = vmatprep.subr.mxu0 0.0
    %v1146 = vand.u32 %v602, 4294901760
    %1147 = vmatpush1.msra.mxu0 %v1146
    %1148 = vmatprep.subr.mxu0 0.0
    %v1149 = vand.u32 %v603, 4294901760
    %1150 = vmatpush1.msra.mxu0 %v1149
    %1151 = vmatprep.subr.mxu0 0.0
    %v1152 = vand.u32 %v604, 4294901760
    %1153 = vmatpush1.msra.mxu0 %v1152
    %1154 = vmatprep.subr.mxu0 0.0
    %v1155 = vand.u32 %v605, 4294901760
    %1156 = vmatpush1.msra.mxu0 %v1155
    %1157 = vmatprep.subr.mxu0 0.0
    %v1158 = vand.u32 %v606, 4294901760
    %1159 = vmatpush1.msra.mxu0 %v1158
    %1160 = vmatprep.subr.mxu0 0.0
    %v1161 = vand.u32 %v607, 4294901760
    %1162 = vmatpush1.msra.mxu0 %v1161
    %1163 = vmatprep.subr.mxu0 0.0
    %v1164 = vand.u32 %v608, 4294901760
    %1165 = vmatpush1.msra.mxu0 %v1164
    %1166 = vmatprep.subr.mxu0 0.0
    %v1167 = vand.u32 %v609, 4294901760
    %1168 = vmatpush1.msra.mxu0 %v1167
    %1169 = vmatprep.subr.mxu0 0.0
    %v1170 = vand.u32 %v610, 4294901760
    %1171 = vmatpush1.msra.mxu0 %v1170
    %1172 = vmatprep.subr.mxu0 0.0
    %v1173 = vand.u32 %v611, 4294901760
    %1174 = vmatpush1.msra.mxu0 %v1173
    %1175 = vmatprep.subr.mxu0 0.0
    %v1176 = vand.u32 %v612, 4294901760
    %1177 = vmatpush1.msra.mxu0 %v1176
    %1178 = vmatprep.subr.mxu0 0.0
    %v1179 = vand.u32 %v613, 4294901760
    %1180 = vmatpush1.msra.mxu0 %v1179
    %1181 = vmatprep.subr.mxu0 0.0
    %v1182 = vand.u32 %v614, 4294901760
    %1183 = vmatpush1.msra.mxu0 %v1182
    %1184 = vmatprep.subr.mxu0 0.0
    %v1185 = vand.u32 %v615, 4294901760
    %1186 = vmatpush1.msra.mxu0 %v1185
    %1187 = vmatprep.subr.mxu0 0.0
    %v1188 = vand.u32 %v616, 4294901760
    %1189 = vmatpush1.msra.mxu0 %v1188
    %1190 = vmatprep.subr.mxu0 0.0
    %v1191 = vand.u32 %v617, 4294901760
    %1192 = vmatpush1.msra.mxu0 %v1191
    %1193 = vmatprep.subr.mxu0 0.0
    %v1194 = vand.u32 %v618, 4294901760
    %1195 = vmatpush1.msra.mxu0 %v1194
    %1196 = vmatprep.subr.mxu0 0.0
    %v1197 = vand.u32 %v619, 4294901760
    %1198 = vmatpush1.msra.mxu0 %v1197
    %1199 = vmatprep.subr.mxu0 0.0
    %v1200 = vand.u32 %v620, 4294901760
    %1201 = vmatpush1.msra.mxu0 %v1200
    %1202 = vmatprep.subr.mxu0 0.0
    %v1203 = vand.u32 %v621, 4294901760
    %1204 = vmatpush1.msra.mxu0 %v1203
    %1205 = vmatprep.subr.mxu0 0.0
    %v1206 = vand.u32 %v622, 4294901760
    %1207 = vmatpush1.msra.mxu0 %v1206
    %v1208 = vand.u32 %v590, 4294901760
    %v1209 = vsub.f32 %v590, %v1208
    %v1210 = vand.u32 %v1209, 4294901760
    %1211 = vmatprep.mubr.f32.mxu0 %v1210
    %v1212 = vand.u32 %v589, 4294901760
    %v1213 = vsub.f32 %v589, %v1212
    %v1214 = vand.u32 %v1213, 4294901760
    %1215 = vmatmul.mubr.f32.gmra.mrb[0].mxu0 %v1214
    %v1216 = vpop.f32.mrb[0].mxu0
    %v1217 = vadd.f32 %v1109, %v1216
    %v1218 = vpop.f32.mrb[0].mxu0
    %1219 = vdwg.mxu0
    %1220 = vmatprep.subr.mxu0 0.0
    %v1221 = vand.u32 %v591, 4294901760
    %v1222 = vsub.f32 %v591, %v1221
    %v1223 = vand.u32 %v1222, 4294901760
    %1224 = vmatpush1.msra.mxu0 %v1223
    %1225 = vmatprep.subr.mxu0 0.0
    %v1226 = vand.u32 %v592, 4294901760
    %v1227 = vsub.f32 %v592, %v1226
    %v1228 = vand.u32 %v1227, 4294901760
    %1229 = vmatpush1.msra.mxu0 %v1228
    %1230 = vmatprep.subr.mxu0 0.0
    %v1231 = vand.u32 %v593, 4294901760
    %v1232 = vsub.f32 %v593, %v1231
    %v1233 = vand.u32 %v1232, 4294901760
    %1234 = vmatpush1.msra.mxu0 %v1233
    %1235 = vmatprep.subr.mxu0 0.0
    %v1236 = vand.u32 %v594, 4294901760
    %v1237 = vsub.f32 %v594, %v1236
    %v1238 = vand.u32 %v1237, 4294901760
    %1239 = vmatpush1.msra.mxu0 %v1238
    %1240 = vmatprep.subr.mxu0 0.0
    %v1241 = vand.u32 %v595, 4294901760
    %v1242 = vsub.f32 %v595, %v1241
    %v1243 = vand.u32 %v1242, 4294901760
    %1244 = vmatpush1.msra.mxu0 %v1243
    %1245 = vmatprep.subr.mxu0 0.0
    %v1246 = vand.u32 %v596, 4294901760
    %v1247 = vsub.f32 %v596, %v1246
    %v1248 = vand.u32 %v1247, 4294901760
    %1249 = vmatpush1.msra.mxu0 %v1248
    %1250 = vmatprep.subr.mxu0 0.0
    %v1251 = vand.u32 %v597, 4294901760
    %v1252 = vsub.f32 %v597, %v1251
    %v1253 = vand.u32 %v1252, 4294901760
    %1254 = vmatpush1.msra.mxu0 %v1253
    %1255 = vmatprep.subr.mxu0 0.0
    %v1256 = vand.u32 %v598, 4294901760
    %v1257 = vsub.f32 %v598, %v1256
    %v1258 = vand.u32 %v1257, 4294901760
    %1259 = vmatpush1.msra.mxu0 %v1258
    %1260 = vmatprep.subr.mxu0 0.0
    %v1261 = vand.u32 %v599, 4294901760
    %v1262 = vsub.f32 %v599, %v1261
    %v1263 = vand.u32 %v1262, 4294901760
    %1264 = vmatpush1.msra.mxu0 %v1263
    %1265 = vmatprep.subr.mxu0 0.0
    %v1266 = vand.u32 %v600, 4294901760
    %v1267 = vsub.f32 %v600, %v1266
    %v1268 = vand.u32 %v1267, 4294901760
    %1269 = vmatpush1.msra.mxu0 %v1268
    %1270 = vmatprep.subr.mxu0 0.0
    %v1271 = vand.u32 %v601, 4294901760
    %v1272 = vsub.f32 %v601, %v1271
    %v1273 = vand.u32 %v1272, 4294901760
    %1274 = vmatpush1.msra.mxu0 %v1273
    %1275 = vmatprep.subr.mxu0 0.0
    %v1276 = vand.u32 %v602, 4294901760
    %v1277 = vsub.f32 %v602, %v1276
    %v1278 = vand.u32 %v1277, 4294901760
    %1279 = vmatpush1.msra.mxu0 %v1278
    %1280 = vmatprep.subr.mxu0 0.0
    %v1281 = vand.u32 %v603, 4294901760
    %v1282 = vsub.f32 %v603, %v1281
    %v1283 = vand.u32 %v1282, 4294901760
    %1284 = vmatpush1.msra.mxu0 %v1283
    %1285 = vmatprep.subr.mxu0 0.0
    %v1286 = vand.u32 %v604, 4294901760
    %v1287 = vsub.f32 %v604, %v1286
    %v1288 = vand.u32 %v1287, 4294901760
    %1289 = vmatpush1.msra.mxu0 %v1288
    %1290 = vmatprep.subr.mxu0 0.0
    %v1291 = vand.u32 %v605, 4294901760
    %v1292 = vsub.f32 %v605, %v1291
    %v1293 = vand.u32 %v1292, 4294901760
    %1294 = vmatpush1.msra.mxu0 %v1293
    %1295 = vmatprep.subr.mxu0 0.0
    %v1296 = vand.u32 %v606, 4294901760
    %v1297 = vsub.f32 %v606, %v1296
    %v1298 = vand.u32 %v1297, 4294901760
    %1299 = vmatpush1.msra.mxu0 %v1298
    %1300 = vmatprep.subr.mxu0 0.0
    %v1301 = vand.u32 %v607, 4294901760
    %v1302 = vsub.f32 %v607, %v1301
    %v1303 = vand.u32 %v1302, 4294901760
    %1304 = vmatpush1.msra.mxu0 %v1303
    %1305 = vmatprep.subr.mxu0 0.0
    %v1306 = vand.u32 %v608, 4294901760
    %v1307 = vsub.f32 %v608, %v1306
    %v1308 = vand.u32 %v1307, 4294901760
    %1309 = vmatpush1.msra.mxu0 %v1308
    %1310 = vmatprep.subr.mxu0 0.0
    %v1311 = vand.u32 %v609, 4294901760
    %v1312 = vsub.f32 %v609, %v1311
    %v1313 = vand.u32 %v1312, 4294901760
    %1314 = vmatpush1.msra.mxu0 %v1313
    %1315 = vmatprep.subr.mxu0 0.0
    %v1316 = vand.u32 %v610, 4294901760
    %v1317 = vsub.f32 %v610, %v1316
    %v1318 = vand.u32 %v1317, 4294901760
    %1319 = vmatpush1.msra.mxu0 %v1318
    %1320 = vmatprep.subr.mxu0 0.0
    %v1321 = vand.u32 %v611, 4294901760
    %v1322 = vsub.f32 %v611, %v1321
    %v1323 = vand.u32 %v1322, 4294901760
    %1324 = vmatpush1.msra.mxu0 %v1323
    %1325 = vmatprep.subr.mxu0 0.0
    %v1326 = vand.u32 %v612, 4294901760
    %v1327 = vsub.f32 %v612, %v1326
    %v1328 = vand.u32 %v1327, 4294901760
    %1329 = vmatpush1.msra.mxu0 %v1328
    %1330 = vmatprep.subr.mxu0 0.0
    %v1331 = vand.u32 %v613, 4294901760
    %v1332 = vsub.f32 %v613, %v1331
    %v1333 = vand.u32 %v1332, 4294901760
    %1334 = vmatpush1.msra.mxu0 %v1333
    %1335 = vmatprep.subr.mxu0 0.0
    %v1336 = vand.u32 %v614, 4294901760
    %v1337 = vsub.f32 %v614, %v1336
    %v1338 = vand.u32 %v1337, 4294901760
    %1339 = vmatpush1.msra.mxu0 %v1338
    %1340 = vmatprep.subr.mxu0 0.0
    %v1341 = vand.u32 %v615, 4294901760
    %v1342 = vsub.f32 %v615, %v1341
    %v1343 = vand.u32 %v1342, 4294901760
    %1344 = vmatpush1.msra.mxu0 %v1343
    %1345 = vmatprep.subr.mxu0 0.0
    %v1346 = vand.u32 %v616, 4294901760
    %v1347 = vsub.f32 %v616, %v1346
    %v1348 = vand.u32 %v1347, 4294901760
    %1349 = vmatpush1.msra.mxu0 %v1348
    %1350 = vmatprep.subr.mxu0 0.0
    %v1351 = vand.u32 %v617, 4294901760
    %v1352 = vsub.f32 %v617, %v1351
    %v1353 = vand.u32 %v1352, 4294901760
    %1354 = vmatpush1.msra.mxu0 %v1353
    %1355 = vmatprep.subr.mxu0 0.0
    %v1356 = vand.u32 %v618, 4294901760
    %v1357 = vsub.f32 %v618, %v1356
    %v1358 = vand.u32 %v1357, 4294901760
    %1359 = vmatpush1.msra.mxu0 %v1358
    %1360 = vmatprep.subr.mxu0 0.0
    %v1361 = vand.u32 %v619, 4294901760
    %v1362 = vsub.f32 %v619, %v1361
    %v1363 = vand.u32 %v1362, 4294901760
    %1364 = vmatpush1.msra.mxu0 %v1363
    %1365 = vmatprep.subr.mxu0 0.0
    %v1366 = vand.u32 %v620, 4294901760
    %v1367 = vsub.f32 %v620, %v1366
    %v1368 = vand.u32 %v1367, 4294901760
    %1369 = vmatpush1.msra.mxu0 %v1368
    %1370 = vmatprep.subr.mxu0 0.0
    %v1371 = vand.u32 %v621, 4294901760
    %v1372 = vsub.f32 %v621, %v1371
    %v1373 = vand.u32 %v1372, 4294901760
    %1374 = vmatpush1.msra.mxu0 %v1373
    %1375 = vmatprep.subr.mxu0 0.0
    %v1376 = vand.u32 %v622, 4294901760
    %v1377 = vsub.f32 %v622, %v1376
    %v1378 = vand.u32 %v1377, 4294901760
    %1379 = vmatpush1.msra.mxu0 %v1378
    %v1380 = vand.u32 %v590, 4294901760
    %1381 = vmatprep.mubr.f32.mxu0 %v1380
    %v1382 = vand.u32 %v589, 4294901760
    %1383 = vmatmul.mubr.f32.gmra.mrb[0].mxu0 %v1382
    %v1384 = vpop.f32.mrb[0].mxu0
    %v1385 = vadd.f32 %v1217, %v1384
    %v1386 = vpop.f32.mrb[0].mxu0
    %1387 = vdwg.mxu0
    %1388 = vmatprep.subr.mxu0 0.0
    %v1389 = vand.u32 %v591, 4294901760
    %1390 = vmatpush1.msra.mxu0 %v1389
    %1391 = vmatprep.subr.mxu0 0.0
    %v1392 = vand.u32 %v592, 4294901760
    %1393 = vmatpush1.msra.mxu0 %v1392
    %1394 = vmatprep.subr.mxu0 0.0
    %v1395 = vand.u32 %v593, 4294901760
    %1396 = vmatpush1.msra.mxu0 %v1395
    %1397 = vmatprep.subr.mxu0 0.0
    %v1398 = vand.u32 %v594, 4294901760
    %1399 = vmatpush1.msra.mxu0 %v1398
    %1400 = vmatprep.subr.mxu0 0.0
    %v1401 = vand.u32 %v595, 4294901760
    %1402 = vmatpush1.msra.mxu0 %v1401
    %1403 = vmatprep.subr.mxu0 0.0
    %v1404 = vand.u32 %v596, 4294901760
    %1405 = vmatpush1.msra.mxu0 %v1404
    %1406 = vmatprep.subr.mxu0 0.0
    %v1407 = vand.u32 %v597, 4294901760
    %1408 = vmatpush1.msra.mxu0 %v1407
    %1409 = vmatprep.subr.mxu0 0.0
    %v1410 = vand.u32 %v598, 4294901760
    %1411 = vmatpush1.msra.mxu0 %v1410
    %1412 = vmatprep.subr.mxu0 0.0
    %v1413 = vand.u32 %v599, 4294901760
    %1414 = vmatpush1.msra.mxu0 %v1413
    %1415 = vmatprep.subr.mxu0 0.0
    %v1416 = vand.u32 %v600, 4294901760
    %1417 = vmatpush1.msra.mxu0 %v1416
    %1418 = vmatprep.subr.mxu0 0.0
    %v1419 = vand.u32 %v601, 4294901760
    %1420 = vmatpush1.msra.mxu0 %v1419
    %1421 = vmatprep.subr.mxu0 0.0
    %v1422 = vand.u32 %v602, 4294901760
    %1423 = vmatpush1.msra.mxu0 %v1422
    %1424 = vmatprep.subr.mxu0 0.0
    %v1425 = vand.u32 %v603, 4294901760
    %1426 = vmatpush1.msra.mxu0 %v1425
    %1427 = vmatprep.subr.mxu0 0.0
    %v1428 = vand.u32 %v604, 4294901760
    %1429 = vmatpush1.msra.mxu0 %v1428
    %1430 = vmatprep.subr.mxu0 0.0
    %v1431 = vand.u32 %v605, 4294901760
    %1432 = vmatpush1.msra.mxu0 %v1431
    %1433 = vmatprep.subr.mxu0 0.0
    %v1434 = vand.u32 %v606, 4294901760
    %1435 = vmatpush1.msra.mxu0 %v1434
    %1436 = vmatprep.subr.mxu0 0.0
    %v1437 = vand.u32 %v607, 4294901760
    %1438 = vmatpush1.msra.mxu0 %v1437
    %1439 = vmatprep.subr.mxu0 0.0
    %v1440 = vand.u32 %v608, 4294901760
    %1441 = vmatpush1.msra.mxu0 %v1440
    %1442 = vmatprep.subr.mxu0 0.0
    %v1443 = vand.u32 %v609, 4294901760
    %1444 = vmatpush1.msra.mxu0 %v1443
    %1445 = vmatprep.subr.mxu0 0.0
    %v1446 = vand.u32 %v610, 4294901760
    %1447 = vmatpush1.msra.mxu0 %v1446
    %1448 = vmatprep.subr.mxu0 0.0
    %v1449 = vand.u32 %v611, 4294901760
    %1450 = vmatpush1.msra.mxu0 %v1449
    %1451 = vmatprep.subr.mxu0 0.0
    %v1452 = vand.u32 %v612, 4294901760
    %1453 = vmatpush1.msra.mxu0 %v1452
    %1454 = vmatprep.subr.mxu0 0.0
    %v1455 = vand.u32 %v613, 4294901760
    %1456 = vmatpush1.msra.mxu0 %v1455
    %1457 = vmatprep.subr.mxu0 0.0
    %v1458 = vand.u32 %v614, 4294901760
    %1459 = vmatpush1.msra.mxu0 %v1458
    %1460 = vmatprep.subr.mxu0 0.0
    %v1461 = vand.u32 %v615, 4294901760
    %1462 = vmatpush1.msra.mxu0 %v1461
    %1463 = vmatprep.subr.mxu0 0.0
    %v1464 = vand.u32 %v616, 4294901760
    %1465 = vmatpush1.msra.mxu0 %v1464
    %1466 = vmatprep.subr.mxu0 0.0
    %v1467 = vand.u32 %v617, 4294901760
    %1468 = vmatpush1.msra.mxu0 %v1467
    %1469 = vmatprep.subr.mxu0 0.0
    %v1470 = vand.u32 %v618, 4294901760
    %1471 = vmatpush1.msra.mxu0 %v1470
    %1472 = vmatprep.subr.mxu0 0.0
    %v1473 = vand.u32 %v619, 4294901760
    %1474 = vmatpush1.msra.mxu0 %v1473
    %1475 = vmatprep.subr.mxu0 0.0
    %v1476 = vand.u32 %v620, 4294901760
    %1477 = vmatpush1.msra.mxu0 %v1476
    %1478 = vmatprep.subr.mxu0 0.0
    %v1479 = vand.u32 %v621, 4294901760
    %1480 = vmatpush1.msra.mxu0 %v1479
    %1481 = vmatprep.subr.mxu0 0.0
    %v1482 = vand.u32 %v622, 4294901760
    %1483 = vmatpush1.msra.mxu0 %v1482
    %v1484 = vand.u32 %v590, 4294901760
    %1485 = vmatprep.mubr.f32.mxu0 %v1484
    %v1486 = vand.u32 %v589, 4294901760
    %1487 = vmatmul.mubr.f32.gmra.mrb[0].mxu0 %v1486
    %v1488 = vpop.f32.mrb[0].mxu0
    %v1489 = vadd.f32 %v1385, %v1488
    %v1490 = vpop.f32.mrb[0].mxu0
    %1491 = vdwg.mxu0
    %v1492 = vxor.u32 %v1489, 2147483648
    %v1493 = vmul.f32 %v1492, 1.442695
    %v1494 = vpow.pop %v1493
    %v1495 = vadd.f32 %v1494, 1.0
    %v1496 = vrcp.pop %v1495
    %v1497 = vmul.f32 1.0, %v1496
    %vm1498 = vcmask 523264
    %1499 = vst.msk [vmem:[#allocation2] sm:$0xff] %vm1498, %v1497
    // Predicated region
    $region22: #{tpu_custom_call.1} parent=1 // pred_check
      _
    $region23: #{tpu_custom_call.1} parent=1 // pred_check_branch
      %1501 = sbr.rel (0) target = $region25
    $region24: #{tpu_custom_call.1} parent=1 // pred_region
      %s1503 = ssub.s32 128, 128
      %1504 = vsyncadd [#allocation3], %s1503
      %s1506 = sshll.u32 [#allocation2], 4
      %s1507 = int_to_ptr.vmem [resolvable:$true] %s1506
      %1509 = dma.vmem_to_hbm [thread:$0]  %s1507, 128, %s5, [#allocation3]
    $region25: #{tpu_custom_call.1} parent=1 // pred_fallthru
      _
    // Predicated region
    $region26: #{tpu_custom_call.1} parent=1 // pred_check
      _
    $region27: #{tpu_custom_call.1} parent=1 // pred_check_branch
      %1511 = sbr.rel (0) target = $region29
    $region28: #{tpu_custom_call.1} parent=1 // pred_region
      %1512 = dma.done [#allocation3], 128
    $region29: #{tpu_custom_call.1} parent=1 // pred_fallthru
      _
    %1513 = vsyncpa [#allocation3], 1

</llo_original>
